<compile_context>
chip_gen: v7x
topology: tpu7x:2x2x1
jax: 0.10.0
libtpu: 0.0.40
codegen_flags: <defaults>
</compile_context>

<pallas_src>
import functools
import math

import jax
import jax.numpy as jnp
import numpy as np
from jax.experimental import pallas as pl
from jax.experimental.pallas import tpu as pltpu


# ----------------------------- Pallas kernel -------------------------------- #
def _rel_attn_kernel(x_ref, w_ref, rr_ref, rw_ref, sincos_ref, mask_ref, out_ref,
                     *, n_head, head_dim, q_tile, compute_dtype, approx_recip):
    D = n_head * head_dim
    half = head_dim // 2
    L = x_ref.shape[1]

    x = x_ref[0]                                   # (L, D) compute_dtype; doubles as K
    sincos_f = sincos_ref[...]                     # (L, hd) f32: [sin(p*f) | cos(p*f)]

    if q_tile == L:                                # static: single query tile
        xq = x
        sincos_q = sincos_f
    else:                                          # dynamic, 8-aligned sublane slice
        row0 = pl.multiple_of(pl.program_id(1) * q_tile, q_tile)
        xq = x_ref[0, pl.ds(row0, q_tile), :]                  # (Lq, D)
        sincos_q = sincos_ref[pl.ds(row0, q_tile), :]          # (Lq, hd)

    # Merged projection weights [Wq * (1/scale) | Wv] (D, 2D): 1/scale is already
    # folded into Wq and the biases in the wrapper -> no per-logit scaling below.
    w = w_ref[...]
    q = jnp.dot(xq, w[:, :D], preferred_element_type=jnp.float32)   # (Lq, D) f32
    v = jnp.dot(x, w[:, D:], preferred_element_type=jnp.float32)    # (L,  D) f32
    v_c = v.astype(compute_dtype)

    # Torch naming: AC uses r_r_bias, BD uses r_w_bias (both pre-scaled by 1/scale).
    q_ac = q + rr_ref[...]                         # (Lq, D) f32
    q_bd = q + rw_ref[...]                         # (Lq, D) f32

    sin_q = sincos_q[:, :half]                     # (Lq, half) f32 — query-position angles
    cos_q = sincos_q[:, half:]
    sincos_c = sincos_f.astype(compute_dtype)      # (L, hd) key-position table for the MXU

    mask_row = mask_ref[0]                         # (1, L) additive mask (0 / -1e30), f32

    outs = []
    for h in range(n_head):                        # static unroll; n_head is small
        lo = h * head_dim
        k_h = x[:, lo:lo + head_dim]               # (L, hd)   (k == x in this module)

        # BD via angle addition (exact, gather/shift free):
        #   BD[q,k] = (q + r_w) . [sin((k-q)f), cos((k-q)f)]
        #           = rot_a(q) . sin(k f) + rot_b(q) . cos(k f)
        a = q_bd[:, lo:lo + half]
        b = q_bd[:, lo + half:lo + head_dim]
        rot_a = a * cos_q + b * sin_q              # (Lq, half) f32
        rot_b = b * cos_q - a * sin_q

        # ONE deep-contraction MXU matmul per head: AC + BD together, depth 2*hd.
        lhs = jnp.concatenate([q_ac[:, lo:lo + head_dim], rot_a, rot_b],
                              axis=1).astype(compute_dtype)              # (Lq, 2hd)
        rhs = jnp.concatenate([k_h, sincos_c], axis=1)                   # (L,  2hd)
        logits = jax.lax.dot_general(lhs, rhs, (((1,), (1,)), ((), ())),
                                     preferred_element_type=jnp.float32)  # (Lq, L)

        # Masked softmax (f32), normalization deferred to the (Lq, hd) output.
        # Additive finite mask (-1e30): identical probabilities for partially
        # masked rows; fully-masked rows give uniform probs instead of NaN.
        logits = logits + mask_row
        logits = logits - jnp.max(logits, axis=-1, keepdims=True)
        p = jnp.exp(logits)
        denom = jnp.sum(p, axis=-1, keepdims=True)                       # (Lq, 1) f32
        # TODO(synk): attention dropout is identity here (eval-mode semantics).

        out_h = jnp.dot(p.astype(compute_dtype), v_c[:, lo:lo + head_dim],
                        preferred_element_type=jnp.float32)              # (Lq, hd)
        out_h = out_h * pl.reciprocal(denom, approx=approx_recip)        # EUP slot
        outs.append(out_h)

    # Single lane-dense full-width store (no per-head masked vst.msk).
    out_ref[0] = jnp.concatenate(outs, axis=1).astype(out_ref.dtype)


# ------------------------------- wrapper ------------------------------------ #
def _vmem_limit_bytes():
    """Per-generation scoped-VMEM request: ~0.85 * physical, capped at 112 MiB."""
    cap = None
    try:
        info = pltpu.get_tpu_info()
        cap = int(getattr(info, "vmem_capacity_bytes", 0)) or None
    except Exception:
        cap = None
    if cap is None:
        cap = 64 * 1024 * 1024        # conservative (v7x-sized) fallback
    return max(32 * 1024 * 1024, min(int(cap * 0.85), 112 * 1024 * 1024))


def relative_multi_head_attn(x, mask, qv_weight, r_r_bias, r_w_bias, n_head,
                             scale=False, compute_dtype=jnp.bfloat16,
                             out_dtype=None, q_tile=None):
    """x: (B, L, D); mask: (B, L) with 1=valid / 0=pad; qv_weight: (2D, D) (torch
    nn.Linear(d_model, 2*d_model, bias=False).weight); r_r_bias / r_w_bias:
    (n_head, D // n_head).  Returns (B, L, D) in out_dtype (default x.dtype)."""
    B, L, D = x.shape
    assert D % n_head == 0
    hd = D // n_head
    assert hd % 2 == 0
    half = hd // 2
    if out_dtype is None:
        out_dtype = x.dtype
    if q_tile is None:
        q_tile = L    # single query tile; use ~256-512 for long L (VMEM bound, extra // axis)
    assert L % q_tile == 0 and (q_tile == L or q_tile % 8 == 0)
    num_qt = L // q_tile
    inv_scale = 1.0 / math.sqrt(hd) if scale else 1.0

    # Sinusoidal table, packed lane-dense as [sin | cos] (L, hd).  Matches
    # RelativeSinusoidalPositionalEmbedding exactly while the padding row of the
    # 1201-row torch table is never selected (L < ~600).
    # TODO(synk): replicate the padding_idx zeroed row for L >= ~600.
    emb = math.log(10000.0) / (half - 1)
    freqs = jnp.exp(jnp.arange(half, dtype=jnp.float32) * -emb)          # (half,)
    ang = jnp.arange(L, dtype=jnp.float32)[:, None] * freqs[None, :]     # (L, half)
    sincos = jnp.concatenate([jnp.sin(ang), jnp.cos(ang)], axis=1)       # (L, hd) f32

    # Cast MXU operands once in the wrapper; fold 1/scale into Wq and both biases
    # so the kernel applies no per-logit scaling (mask is added unscaled, after).
    xc = x.astype(compute_dtype)
    w_qv = jnp.concatenate([qv_weight[:D].T * inv_scale, qv_weight[D:].T],
                           axis=1).astype(compute_dtype)                  # (D, 2D)
    rr = (r_r_bias.reshape(1, D) * inv_scale).astype(jnp.float32)         # AC bias
    rw = (r_w_bias.reshape(1, D) * inv_scale).astype(jnp.float32)         # BD bias
    mask_add = ((mask.astype(jnp.float32) - 1.0) * 1e30).reshape(B, 1, L)

    kernel = functools.partial(
        _rel_attn_kernel, n_head=n_head, head_dim=hd, q_tile=q_tile,
        compute_dtype=compute_dtype,
        approx_recip=(jnp.dtype(compute_dtype) == jnp.dtype(jnp.bfloat16)))

    out = pl.pallas_call(
        kernel,
        out_shape=jax.ShapeDtypeStruct((B, L, D), out_dtype),
        grid=(B, num_qt),
        in_specs=[
            pl.BlockSpec((1, L, D), lambda b, i: (b, 0, 0)),     # x (K/V source; q rows sliced in-kernel)
            pl.BlockSpec((D, 2 * D), lambda b, i: (0, 0)),       # [Wq/scale | Wv] merged
            pl.BlockSpec((1, D), lambda b, i: (0, 0)),           # r_r_bias (AC), pre-scaled
            pl.BlockSpec((1, D), lambda b, i: (0, 0)),           # r_w_bias (BD), pre-scaled
            pl.BlockSpec((L, hd), lambda b, i: (0, 0)),          # [sin | cos] table
            pl.BlockSpec((1, 1, L), lambda b, i: (b, 0, 0)),     # additive mask
        ],
        out_specs=pl.BlockSpec((1, q_tile, D), lambda b, i: (b, i, 0)),  # lane-dense output
        compiler_params=pltpu.CompilerParams(
            dimension_semantics=("parallel", "parallel"),
            vmem_limit_bytes=_vmem_limit_bytes()),
    )(xc, w_qv, rr, rw, sincos, mask_add)
    return out


# ------------------------ pure-numpy reference (torch-faithful) ------------- #
def _reference(x, mask, qv_weight, r_r_bias, r_w_bias, n_head, scale=False):
    x = np.asarray(x, np.float32)
    mask = np.asarray(mask, np.float32)
    qv_weight = np.asarray(qv_weight, np.float32)
    r_r_bias = np.asarray(r_r_bias, np.float32)
    r_w_bias = np.asarray(r_w_bias, np.float32)

    B, L, D = x.shape
    hd = D // n_head
    scale_val = math.sqrt(hd) if scale else 1.0

    # RelativeSinusoidalPositionalEmbedding(hd, padding_idx=0, init_size=1200)
    num = 1200 + 1
    half = hd // 2
    emb = math.log(10000.0) / (half - 1)
    freqs = np.exp(np.arange(half, dtype=np.float32) * -emb)
    vals = np.arange(-num // 2, num // 2, dtype=np.float32)[:, None] * freqs[None, :]
    table = np.concatenate([np.sin(vals), np.cos(vals)], axis=1)
    table[0, :] = 0.0                       # padding_idx
    origin_shift = num // 2 + 1
    pos_embed = table[np.arange(-L, L) + origin_shift]          # (2L, hd)

    qv = x @ qv_weight.T
    q, v = qv[..., :D], qv[..., D:]
    q = q.reshape(B, L, n_head, hd).transpose(0, 2, 1, 3)
    k = x.reshape(B, L, n_head, hd).transpose(0, 2, 1, 3)
    v = v.reshape(B, L, n_head, hd).transpose(0, 2, 1, 3)

    rw_head_q = q + r_r_bias[None, :, None, :]
    AC = np.einsum('bnqd,bnkd->bnqk', rw_head_q, k)
    D_ = np.einsum('nd,ld->nl', r_w_bias, pos_embed)[None, :, None]
    B_ = np.einsum('bnqd,ld->bnql', q, pos_embed)
    BD = B_ + D_

    # _shift
    zero_pad = np.zeros((B, n_head, L, 1), dtype=BD.dtype)
    BD = np.concatenate([BD, zero_pad], axis=-1).reshape(B, n_head, 2 * L + 1, L)
    BD = BD[:, :, :-1].reshape(B, n_head, L, 2 * L)
    BD = BD[:, :, :, L:]

    attn = (AC + BD) / scale_val
    attn = np.where(mask[:, None, None, :] == 0, -np.inf, attn)
    attn = attn - attn.max(axis=-1, keepdims=True)
    e = np.exp(attn)
    attn = e / e.sum(axis=-1, keepdims=True)
    out = np.einsum('bnqk,bnkd->bnqd', attn, v)
    return out.transpose(0, 2, 1, 3).reshape(B, L, D)


# --------------------------------- main -------------------------------------- #
if __name__ == "__main__":
    B, L, d_model, n_head = 2, 16, 32, 4
    hd = d_model // n_head

    key = jax.random.PRNGKey(0)
    kx, kw, kr, kwb = jax.random.split(key, 4)

    x = jax.random.normal(kx, (B, L, d_model), dtype=jnp.float32)
    # mask: 1 = valid token, 0 = pad (last three positions of batch 1 are padding)
    mask = jnp.ones((B, L), dtype=jnp.float32).at[1, -3:].set(0.0)

    # deterministic synthetic parameters (shapes from __init__)
    qv_weight = 0.1 * jax.random.normal(kw, (2 * d_model, d_model), dtype=jnp.float32)
    xavier_std = math.sqrt(2.0 / (n_head + hd))
    r_r_bias = xavier_std * jax.random.normal(kr, (n_head, hd), dtype=jnp.float32)
    r_w_bias = xavier_std * jax.random.normal(kwb, (n_head, hd), dtype=jnp.float32)

    ref = _reference(x, mask, qv_weight, r_r_bias, r_w_bias, n_head, scale=False)
    ref_s = _reference(x, mask, qv_weight, r_r_bias, r_w_bias, n_head, scale=True)

    # 1) float32 compute path, single q tile: tight numerical check.
    out_f32 = relative_multi_head_attn(x, mask, qv_weight, r_r_bias, r_w_bias,
                                       n_head, scale=False,
                                       compute_dtype=jnp.float32)
    out_f32 = jax.block_until_ready(out_f32)
    np.testing.assert_allclose(np.asarray(out_f32), ref, rtol=2e-3, atol=2e-3)

    # 2) float32, scale=True: validates the 1/scale folding into Wq / biases.
    out_sc = relative_multi_head_attn(x, mask, qv_weight, r_r_bias, r_w_bias,
                                      n_head, scale=True,
                                      compute_dtype=jnp.float32)
    out_sc = jax.block_until_ready(out_sc)
    np.testing.assert_allclose(np.asarray(out_sc), ref_s, rtol=2e-3, atol=2e-3)

    # 3) float32, q-tiled path (grid=(B, 2)): validates the Lq tiling.
    out_qt = relative_multi_head_attn(x, mask, qv_weight, r_r_bias, r_w_bias,
                                      n_head, scale=False,
                                      compute_dtype=jnp.float32, q_tile=8)
    out_qt = jax.block_until_ready(out_qt)
    np.testing.assert_allclose(np.asarray(out_qt), ref, rtol=2e-3, atol=2e-3)

    # 4) bfloat16 MXU path (performance configuration): looser tolerance.
    out_bf16 = relative_multi_head_attn(x, mask, qv_weight, r_r_bias, r_w_bias,
                                        n_head, scale=False,
                                        compute_dtype=jnp.bfloat16)
    out_bf16 = jax.block_until_ready(out_bf16)
    np.testing.assert_allclose(np.asarray(out_bf16), ref, rtol=1e-1, atol=1e-1)

    print("KERNEL_OK")
</pallas_src>

<mosaic_0001>
module attributes {stable_mosaic.version = 11 : i64} {
  func.func @_rel_attn_kernel(%arg0: i32, %arg1: i32, %arg2: memref<1x16x32xf32, #tpu.memory_space<vmem>>, %arg3: memref<32x64xf32, #tpu.memory_space<vmem>>, %arg4: memref<1x32xf32, #tpu.memory_space<vmem>>, %arg5: memref<1x32xf32, #tpu.memory_space<vmem>>, %arg6: memref<16x8xf32, #tpu.memory_space<vmem>>, %arg7: memref<1x1x16xf32, #tpu.memory_space<vmem>>, %arg8: memref<1x16x32xf32, #tpu.memory_space<vmem>>) attributes {dimension_semantics = [#tpu.dimension_semantics<parallel>, #tpu.dimension_semantics<parallel>], iteration_bounds = array<i64: 2, 1>, scalar_prefetch = 0 : i64, scratch_operands = 0 : i64, tpu.core_type = #tpu.core_type<tc>, window_params = [{transform_indices = @transform_0, window_bounds = array<i64: 1, 16, 32>}, {pipeline_mode = #tpu.pipeline_mode<synchronous>, transform_indices = @transform_1, window_bounds = array<i64: 32, 64>}, {pipeline_mode = #tpu.pipeline_mode<synchronous>, transform_indices = @transform_2, window_bounds = array<i64: 1, 32>}, {pipeline_mode = #tpu.pipeline_mode<synchronous>, transform_indices = @transform_3, window_bounds = array<i64: 1, 32>}, {pipeline_mode = #tpu.pipeline_mode<synchronous>, transform_indices = @transform_4, window_bounds = array<i64: 16, 8>}, {transform_indices = @transform_5, window_bounds = array<i64: 1, 1, 16>}, {transform_indices = @transform_6, window_bounds = array<i64: 1, 16, 32>}]} {
    %c0 = arith.constant 0 : index
    %c0_0 = arith.constant 0 : index
    %c0_1 = arith.constant 0 : index
    %0 = vector.load %arg2[%c0, %c0_0, %c0_1] : memref<1x16x32xf32, #tpu.memory_space<vmem>>, vector<1x16x32xf32>
    %1 = vector.shape_cast %0 : vector<1x16x32xf32> to vector<16x32xf32>
    %c0_2 = arith.constant 0 : index
    %c0_3 = arith.constant 0 : index
    %2 = vector.load %arg6[%c0_2, %c0_3] : memref<16x8xf32, #tpu.memory_space<vmem>>, vector<16x8xf32>
    %c0_4 = arith.constant 0 : index
    %c0_5 = arith.constant 0 : index
    %3 = vector.load %arg3[%c0_4, %c0_5] : memref<32x64xf32, #tpu.memory_space<vmem>>, vector<32x64xf32>
    %4 = vector.extract_strided_slice %3 {offsets = [0, 0], sizes = [32, 32], strides = [1, 1]} : vector<32x64xf32> to vector<32x32xf32>
    %cst = arith.constant dense<0.000000e+00> : vector<16x32xf32>
    %5 = tpu.matmul %1, %4, %cst {dimension_numbers = #tpu.dot_dimension_numbers<[1], [0], [0], [1], [0, 0, 1, 1], [], []>} : vector<16x32xf32>, vector<32x32xf32>, vector<16x32xf32> -> vector<16x32xf32>
    %6 = vector.extract_strided_slice %3 {offsets = [0, 32], sizes = [32, 32], strides = [1, 1]} : vector<32x64xf32> to vector<32x32xf32>
    %cst_6 = arith.constant dense<0.000000e+00> : vector<16x32xf32>
    %7 = tpu.matmul %1, %6, %cst_6 {dimension_numbers = #tpu.dot_dimension_numbers<[1], [0], [0], [1], [0, 0, 1, 1], [], []>} : vector<16x32xf32>, vector<32x32xf32>, vector<16x32xf32> -> vector<16x32xf32>
    %c0_7 = arith.constant 0 : index
    %c0_8 = arith.constant 0 : index
    %8 = vector.load %arg4[%c0_7, %c0_8] : memref<1x32xf32, #tpu.memory_space<vmem>>, vector<1x32xf32>
    %9 = vector.broadcast %8 : vector<1x32xf32> to vector<16x32xf32>
    %10 = arith.addf %5, %9 : vector<16x32xf32>
    %c0_9 = arith.constant 0 : index
    %c0_10 = arith.constant 0 : index
    %11 = vector.load %arg5[%c0_9, %c0_10] : memref<1x32xf32, #tpu.memory_space<vmem>>, vector<1x32xf32>
    %12 = vector.broadcast %11 : vector<1x32xf32> to vector<16x32xf32>
    %13 = arith.addf %5, %12 : vector<16x32xf32>
    %14 = vector.extract_strided_slice %2 {offsets = [0, 0], sizes = [16, 4], strides = [1, 1]} : vector<16x8xf32> to vector<16x4xf32>
    %15 = vector.extract_strided_slice %2 {offsets = [0, 4], sizes = [16, 4], strides = [1, 1]} : vector<16x8xf32> to vector<16x4xf32>
    %c0_11 = arith.constant 0 : index
    %c0_12 = arith.constant 0 : index
    %c0_13 = arith.constant 0 : index
    %16 = vector.load %arg7[%c0_11, %c0_12, %c0_13] : memref<1x1x16xf32, #tpu.memory_space<vmem>>, vector<1x1x16xf32>
    %17 = vector.shape_cast %16 : vector<1x1x16xf32> to vector<1x16xf32>
    %18 = vector.extract_strided_slice %1 {offsets = [0, 0], sizes = [16, 8], strides = [1, 1]} : vector<16x32xf32> to vector<16x8xf32>
    %19 = vector.extract_strided_slice %13 {offsets = [0, 0], sizes = [16, 4], strides = [1, 1]} : vector<16x32xf32> to vector<16x4xf32>
    %20 = vector.extract_strided_slice %13 {offsets = [0, 4], sizes = [16, 4], strides = [1, 1]} : vector<16x32xf32> to vector<16x4xf32>
    %21 = arith.mulf %19, %15 : vector<16x4xf32>
    %22 = arith.mulf %20, %14 : vector<16x4xf32>
    %23 = arith.addf %21, %22 : vector<16x4xf32>
    %24 = arith.mulf %20, %15 : vector<16x4xf32>
    %25 = arith.mulf %19, %14 : vector<16x4xf32>
    %26 = arith.subf %24, %25 : vector<16x4xf32>
    %27 = vector.extract_strided_slice %10 {offsets = [0, 0], sizes = [16, 8], strides = [1, 1]} : vector<16x32xf32> to vector<16x8xf32>
    %28 = tpu.concatenate %27, %23, %26 in 1 : vector<16x8xf32>, vector<16x4xf32>, vector<16x4xf32> -> vector<16x16xf32>
    %29 = tpu.concatenate %18, %2 in 1 : vector<16x8xf32>, vector<16x8xf32> -> vector<16x16xf32>
    %cst_14 = arith.constant dense<0.000000e+00> : vector<16x16xf32>
    %30 = tpu.matmul %28, %29, %cst_14 {dimension_numbers = #tpu.dot_dimension_numbers<[1], [1], [0], [0], [0, 0, 1, 0], [], []>} : vector<16x16xf32>, vector<16x16xf32>, vector<16x16xf32> -> vector<16x16xf32>
    %31 = vector.broadcast %17 : vector<1x16xf32> to vector<16x16xf32>
    %32 = arith.addf %30, %31 : vector<16x16xf32>
    %cst_15 = arith.constant dense<0xFF800000> : vector<16xf32>
    %33 = vector.multi_reduction <maximumf>, %32, %cst_15 [1] : vector<16x16xf32> to vector<16xf32>
    %34 = vector.shape_cast %33 : vector<16xf32> to vector<16x1xf32>
    %35 = vector.broadcast %34 : vector<16x1xf32> to vector<16x16xf32>
    %36 = arith.subf %32, %35 : vector<16x16xf32>
    %37 = math.exp %36 : vector<16x16xf32>
    %cst_16 = arith.constant dense<0.000000e+00> : vector<16xf32>
    %38 = vector.multi_reduction <add>, %37, %cst_16 [1] : vector<16x16xf32> to vector<16xf32>
    %39 = vector.shape_cast %38 : vector<16xf32> to vector<16x1xf32>
    %40 = vector.extract_strided_slice %7 {offsets = [0, 0], sizes = [16, 8], strides = [1, 1]} : vector<16x32xf32> to vector<16x8xf32>
    %cst_17 = arith.constant dense<0.000000e+00> : vector<16x8xf32>
    %41 = tpu.matmul %37, %40, %cst_17 {dimension_numbers = #tpu.dot_dimension_numbers<[1], [0], [0], [1], [0, 0, 1, 1], [], []>} : vector<16x16xf32>, vector<16x8xf32>, vector<16x8xf32> -> vector<16x8xf32>
    %42 = tpu.reciprocal %39 : vector<16x1xf32> -> vector<16x1xf32>
    %43 = vector.broadcast %42 : vector<16x1xf32> to vector<16x8xf32>
    %44 = arith.mulf %41, %43 : vector<16x8xf32>
    %45 = vector.extract_strided_slice %1 {offsets = [0, 8], sizes = [16, 8], strides = [1, 1]} : vector<16x32xf32> to vector<16x8xf32>
    %46 = vector.extract_strided_slice %13 {offsets = [0, 8], sizes = [16, 4], strides = [1, 1]} : vector<16x32xf32> to vector<16x4xf32>
    %47 = vector.extract_strided_slice %13 {offsets = [0, 12], sizes = [16, 4], strides = [1, 1]} : vector<16x32xf32> to vector<16x4xf32>
    %48 = arith.mulf %46, %15 : vector<16x4xf32>
    %49 = arith.mulf %47, %14 : vector<16x4xf32>
    %50 = arith.addf %48, %49 : vector<16x4xf32>
    %51 = arith.mulf %47, %15 : vector<16x4xf32>
    %52 = arith.mulf %46, %14 : vector<16x4xf32>
    %53 = arith.subf %51, %52 : vector<16x4xf32>
    %54 = vector.extract_strided_slice %10 {offsets = [0, 8], sizes = [16, 8], strides = [1, 1]} : vector<16x32xf32> to vector<16x8xf32>
    %55 = tpu.concatenate %54, %50, %53 in 1 : vector<16x8xf32>, vector<16x4xf32>, vector<16x4xf32> -> vector<16x16xf32>
    %56 = tpu.concatenate %45, %2 in 1 : vector<16x8xf32>, vector<16x8xf32> -> vector<16x16xf32>
    %cst_18 = arith.constant dense<0.000000e+00> : vector<16x16xf32>
    %57 = tpu.matmul %55, %56, %cst_18 {dimension_numbers = #tpu.dot_dimension_numbers<[1], [1], [0], [0], [0, 0, 1, 0], [], []>} : vector<16x16xf32>, vector<16x16xf32>, vector<16x16xf32> -> vector<16x16xf32>
    %58 = vector.broadcast %17 : vector<1x16xf32> to vector<16x16xf32>
    %59 = arith.addf %57, %58 : vector<16x16xf32>
    %cst_19 = arith.constant dense<0xFF800000> : vector<16xf32>
    %60 = vector.multi_reduction <maximumf>, %59, %cst_19 [1] : vector<16x16xf32> to vector<16xf32>
    %61 = vector.shape_cast %60 : vector<16xf32> to vector<16x1xf32>
    %62 = vector.broadcast %61 : vector<16x1xf32> to vector<16x16xf32>
    %63 = arith.subf %59, %62 : vector<16x16xf32>
    %64 = math.exp %63 : vector<16x16xf32>
    %cst_20 = arith.constant dense<0.000000e+00> : vector<16xf32>
    %65 = vector.multi_reduction <add>, %64, %cst_20 [1] : vector<16x16xf32> to vector<16xf32>
    %66 = vector.shape_cast %65 : vector<16xf32> to vector<16x1xf32>
    %67 = vector.extract_strided_slice %7 {offsets = [0, 8], sizes = [16, 8], strides = [1, 1]} : vector<16x32xf32> to vector<16x8xf32>
    %cst_21 = arith.constant dense<0.000000e+00> : vector<16x8xf32>
    %68 = tpu.matmul %64, %67, %cst_21 {dimension_numbers = #tpu.dot_dimension_numbers<[1], [0], [0], [1], [0, 0, 1, 1], [], []>} : vector<16x16xf32>, vector<16x8xf32>, vector<16x8xf32> -> vector<16x8xf32>
    %69 = tpu.reciprocal %66 : vector<16x1xf32> -> vector<16x1xf32>
    %70 = vector.broadcast %69 : vector<16x1xf32> to vector<16x8xf32>
    %71 = arith.mulf %68, %70 : vector<16x8xf32>
    %72 = vector.extract_strided_slice %1 {offsets = [0, 16], sizes = [16, 8], strides = [1, 1]} : vector<16x32xf32> to vector<16x8xf32>
    %73 = vector.extract_strided_slice %13 {offsets = [0, 16], sizes = [16, 4], strides = [1, 1]} : vector<16x32xf32> to vector<16x4xf32>
    %74 = vector.extract_strided_slice %13 {offsets = [0, 20], sizes = [16, 4], strides = [1, 1]} : vector<16x32xf32> to vector<16x4xf32>
    %75 = arith.mulf %73, %15 : vector<16x4xf32>
    %76 = arith.mulf %74, %14 : vector<16x4xf32>
    %77 = arith.addf %75, %76 : vector<16x4xf32>
    %78 = arith.mulf %74, %15 : vector<16x4xf32>
    %79 = arith.mulf %73, %14 : vector<16x4xf32>
    %80 = arith.subf %78, %79 : vector<16x4xf32>
    %81 = vector.extract_strided_slice %10 {offsets = [0, 16], sizes = [16, 8], strides = [1, 1]} : vector<16x32xf32> to vector<16x8xf32>
    %82 = tpu.concatenate %81, %77, %80 in 1 : vector<16x8xf32>, vector<16x4xf32>, vector<16x4xf32> -> vector<16x16xf32>
    %83 = tpu.concatenate %72, %2 in 1 : vector<16x8xf32>, vector<16x8xf32> -> vector<16x16xf32>
    %cst_22 = arith.constant dense<0.000000e+00> : vector<16x16xf32>
    %84 = tpu.matmul %82, %83, %cst_22 {dimension_numbers = #tpu.dot_dimension_numbers<[1], [1], [0], [0], [0, 0, 1, 0], [], []>} : vector<16x16xf32>, vector<16x16xf32>, vector<16x16xf32> -> vector<16x16xf32>
    %85 = vector.broadcast %17 : vector<1x16xf32> to vector<16x16xf32>
    %86 = arith.addf %84, %85 : vector<16x16xf32>
    %cst_23 = arith.constant dense<0xFF800000> : vector<16xf32>
    %87 = vector.multi_reduction <maximumf>, %86, %cst_23 [1] : vector<16x16xf32> to vector<16xf32>
    %88 = vector.shape_cast %87 : vector<16xf32> to vector<16x1xf32>
    %89 = vector.broadcast %88 : vector<16x1xf32> to vector<16x16xf32>
    %90 = arith.subf %86, %89 : vector<16x16xf32>
    %91 = math.exp %90 : vector<16x16xf32>
    %cst_24 = arith.constant dense<0.000000e+00> : vector<16xf32>
    %92 = vector.multi_reduction <add>, %91, %cst_24 [1] : vector<16x16xf32> to vector<16xf32>
    %93 = vector.shape_cast %92 : vector<16xf32> to vector<16x1xf32>
    %94 = vector.extract_strided_slice %7 {offsets = [0, 16], sizes = [16, 8], strides = [1, 1]} : vector<16x32xf32> to vector<16x8xf32>
    %cst_25 = arith.constant dense<0.000000e+00> : vector<16x8xf32>
    %95 = tpu.matmul %91, %94, %cst_25 {dimension_numbers = #tpu.dot_dimension_numbers<[1], [0], [0], [1], [0, 0, 1, 1], [], []>} : vector<16x16xf32>, vector<16x8xf32>, vector<16x8xf32> -> vector<16x8xf32>
    %96 = tpu.reciprocal %93 : vector<16x1xf32> -> vector<16x1xf32>
    %97 = vector.broadcast %96 : vector<16x1xf32> to vector<16x8xf32>
    %98 = arith.mulf %95, %97 : vector<16x8xf32>
    %99 = vector.extract_strided_slice %1 {offsets = [0, 24], sizes = [16, 8], strides = [1, 1]} : vector<16x32xf32> to vector<16x8xf32>
    %100 = vector.extract_strided_slice %13 {offsets = [0, 24], sizes = [16, 4], strides = [1, 1]} : vector<16x32xf32> to vector<16x4xf32>
    %101 = vector.extract_strided_slice %13 {offsets = [0, 28], sizes = [16, 4], strides = [1, 1]} : vector<16x32xf32> to vector<16x4xf32>
    %102 = arith.mulf %100, %15 : vector<16x4xf32>
    %103 = arith.mulf %101, %14 : vector<16x4xf32>
    %104 = arith.addf %102, %103 : vector<16x4xf32>
    %105 = arith.mulf %101, %15 : vector<16x4xf32>
    %106 = arith.mulf %100, %14 : vector<16x4xf32>
    %107 = arith.subf %105, %106 : vector<16x4xf32>
    %108 = vector.extract_strided_slice %10 {offsets = [0, 24], sizes = [16, 8], strides = [1, 1]} : vector<16x32xf32> to vector<16x8xf32>
    %109 = tpu.concatenate %108, %104, %107 in 1 : vector<16x8xf32>, vector<16x4xf32>, vector<16x4xf32> -> vector<16x16xf32>
    %110 = tpu.concatenate %99, %2 in 1 : vector<16x8xf32>, vector<16x8xf32> -> vector<16x16xf32>
    %cst_26 = arith.constant dense<0.000000e+00> : vector<16x16xf32>
    %111 = tpu.matmul %109, %110, %cst_26 {dimension_numbers = #tpu.dot_dimension_numbers<[1], [1], [0], [0], [0, 0, 1, 0], [], []>} : vector<16x16xf32>, vector<16x16xf32>, vector<16x16xf32> -> vector<16x16xf32>
    %112 = vector.broadcast %17 : vector<1x16xf32> to vector<16x16xf32>
    %113 = arith.addf %111, %112 : vector<16x16xf32>
    %cst_27 = arith.constant dense<0xFF800000> : vector<16xf32>
    %114 = vector.multi_reduction <maximumf>, %113, %cst_27 [1] : vector<16x16xf32> to vector<16xf32>
    %115 = vector.shape_cast %114 : vector<16xf32> to vector<16x1xf32>
    %116 = vector.broadcast %115 : vector<16x1xf32> to vector<16x16xf32>
    %117 = arith.subf %113, %116 : vector<16x16xf32>
    %118 = math.exp %117 : vector<16x16xf32>
    %cst_28 = arith.constant dense<0.000000e+00> : vector<16xf32>
    %119 = vector.multi_reduction <add>, %118, %cst_28 [1] : vector<16x16xf32> to vector<16xf32>
    %120 = vector.shape_cast %119 : vector<16xf32> to vector<16x1xf32>
    %121 = vector.extract_strided_slice %7 {offsets = [0, 24], sizes = [16, 8], strides = [1, 1]} : vector<16x32xf32> to vector<16x8xf32>
    %cst_29 = arith.constant dense<0.000000e+00> : vector<16x8xf32>
    %122 = tpu.matmul %118, %121, %cst_29 {dimension_numbers = #tpu.dot_dimension_numbers<[1], [0], [0], [1], [0, 0, 1, 1], [], []>} : vector<16x16xf32>, vector<16x8xf32>, vector<16x8xf32> -> vector<16x8xf32>
    %123 = tpu.reciprocal %120 : vector<16x1xf32> -> vector<16x1xf32>
    %124 = vector.broadcast %123 : vector<16x1xf32> to vector<16x8xf32>
    %125 = arith.mulf %122, %124 : vector<16x8xf32>
    %126 = tpu.concatenate %44, %71, %98, %125 in 1 : vector<16x8xf32>, vector<16x8xf32>, vector<16x8xf32>, vector<16x8xf32> -> vector<16x32xf32>
    %c0_30 = arith.constant 0 : index
    %c0_31 = arith.constant 0 : index
    %c0_32 = arith.constant 0 : index
    %127 = vector.load %arg8[%c0_30, %c0_31, %c0_32] : memref<1x16x32xf32, #tpu.memory_space<vmem>>, vector<1x16x32xf32>
    %128 = vector.shape_cast %127 : vector<1x16x32xf32> to vector<16x32xf32>
    %129 = vector.shape_cast %126 : vector<16x32xf32> to vector<1x16x32xf32>
    tpu.vector_store %arg8[%c0_30, %c0_31, %c0_32], %129 {strides = array<i32>} : memref<1x16x32xf32, #tpu.memory_space<vmem>>, vector<1x16x32xf32>,
    return
  }
  func.func @transform_0(%arg0: i32, %arg1: i32) -> (i32, i32, i32) {
    %c0_i32 = arith.constant 0 : i32
    %c0_i32_0 = arith.constant 0 : i32
    %c0_i32_1 = arith.constant 0 : i32
    return %arg0, %c0_i32, %c0_i32_0 : i32, i32, i32
  }
  func.func @transform_1(%arg0: i32, %arg1: i32) -> (i32, i32) {
    %c0_i32 = arith.constant 0 : i32
    %c0_i32_0 = arith.constant 0 : i32
    %c0_i32_1 = arith.constant 0 : i32
    return %c0_i32, %c0_i32_0 : i32, i32
  }
  func.func @transform_2(%arg0: i32, %arg1: i32) -> (i32, i32) {
    %c0_i32 = arith.constant 0 : i32
    %c0_i32_0 = arith.constant 0 : i32
    %c0_i32_1 = arith.constant 0 : i32
    return %c0_i32, %c0_i32_0 : i32, i32
  }
  func.func @transform_3(%arg0: i32, %arg1: i32) -> (i32, i32) {
    %c0_i32 = arith.constant 0 : i32
    %c0_i32_0 = arith.constant 0 : i32
    %c0_i32_1 = arith.constant 0 : i32
    return %c0_i32, %c0_i32_0 : i32, i32
  }
  func.func @transform_4(%arg0: i32, %arg1: i32) -> (i32, i32) {
    %c0_i32 = arith.constant 0 : i32
    %c0_i32_0 = arith.constant 0 : i32
    %c0_i32_1 = arith.constant 0 : i32
    return %c0_i32, %c0_i32_0 : i32, i32
  }
  func.func @transform_5(%arg0: i32, %arg1: i32) -> (i32, i32, i32) {
    %c0_i32 = arith.constant 0 : i32
    %c0_i32_0 = arith.constant 0 : i32
    %c0_i32_1 = arith.constant 0 : i32
    return %arg0, %c0_i32, %c0_i32_0 : i32, i32, i32
  }
  func.func @transform_6(%arg0: i32, %arg1: i32) -> (i32, i32, i32) {
    %c0_i32 = arith.constant 0 : i32
    %c0_i32_0 = arith.constant 0 : i32
    return %arg0, %arg1, %c0_i32 : i32, i32, i32
  }
}

</mosaic_0001>

<llo_original>
// kernel: tpu_custom_call.1
$region0: #{tpu_custom_call.1}
  #allocation0 [shape = 'u32[]', space=smem, size = 0x4, offset = 0x4, fixed_abs, tag = 'smem constant byte address 0x4 - core index']
  #allocation1 [shape = 'u32[144,128]{1,0:T(1,128)}', space=vmem, size = 0x12000, scoped, tag = 'internal scratch']
  %s0 = inlined_call_operand.hbm [shape: f32[2,16,32], index: 0, kind: input, shape index: {}]
  %s1 = inlined_call_operand.hbm [shape: f32[32,64], index: 1, kind: input, shape index: {}]
  %s2 = inlined_call_operand.vmem [shape: f32[1,32], index: 2, kind: input, shape index: {}]
  %s3 = inlined_call_operand.vmem [shape: f32[1,32], index: 3, kind: input, shape index: {}]
  %s4 = inlined_call_operand.vmem [shape: f32[16,8], index: 4, kind: input, shape index: {}]
  %s5 = inlined_call_operand.vmem [shape: f32[2,1,16], index: 5, kind: input, shape index: {}]
  %s6 = inlined_call_operand.hbm [shape: f32[2,16,32], index: 6, kind: output, shape index: {}]
  %s7 = sld [smem:[#allocation0]]
  $region65: #{tpu_custom_call.1} parent=0
    _
  %s9 = ssub.s32 1, %s7
  %s10 = scalar_select 0, %s9, %s7
  $region1: #{tpu_custom_call.1} parent=0
    #allocation2 [shape = 'u8[16384]{0}', space=vmem, size = 0x4000, scoped, tag = 'input window, operand 0']
    #allocation3 [shape = 's32[2]{0}', space=sflag, size = 0x8, scoped, tag = 'scoped memory for tpu_custom_call.1']
    #allocation4 [shape = 's32[2]{0}', space=sflag, size = 0x8, scoped, tag = 'scoped memory for tpu_custom_call.1']
    #allocation5 [shape = 'u8[16384]{0}', space=vmem, size = 0x4000, scoped, tag = 'input window, operand 1, single buffered']
    #allocation6 [shape = 's32[1]{0}', space=sflag, size = 0x4, scoped, tag = 'scoped memory for tpu_custom_call.1']
    #allocation7 [shape = 'u8[16384]{0}', space=vmem, size = 0x4000, scoped, tag = 'output window, operand 0']
    %11 = vsyncpa [#allocation3], 0
    %s12 = scalar_lea.sflag [#allocation3], 1
    %13 = vsyncpa %s12, 0
    %14 = vsyncpa [#allocation6], 0
    %15 = vsyncpa [#allocation4], 0
    %s16 = scalar_lea.sflag [#allocation4], 1
    %17 = vsyncpa %s16, 0
    loop: start=0, step=1, limit=4
    $region2: #{tpu_custom_call.1} parent=1 // loop_pre_header
      _
    $region3: #{tpu_custom_call.1} parent=1 // loop_header
      %s19 = sphi 0, %s23
      %p20 = scmp.ge.s32.totalorder %s19, 4
      %s26 = sphi 0, %s38
      %s27 = sphi 0, %s34
      %s28 = sphi 0, %s26
      %s29 = sphi 0, %s27
      %s30 = sphi 0, %s28
      %s31 = sphi 0, %s29
      %s41 = sphi 0, %s43
      %s44 = sphi 0, %s41
      %s45 = sphi 0, %s44
      %s61 = sphi 0, %s45
      %s65 = sphi 0, %s65
      %s67 = sphi 0, %s65
      %s68 = sphi 0, %s67
      %s82 = sphi 0, %s68
      %s86 = sphi 0, %s86
      %s88 = sphi 0, %s86
      %s89 = sphi 0, %s88
      %s103 = sphi 0, %s89
      %s107 = sphi 0, %s107
      %s109 = sphi 0, %s107
      %s110 = sphi 0, %s109
      %s124 = sphi 0, %s110
      %s128 = sphi 0, %s128
      %s130 = sphi 0, %s128
      %s131 = sphi 0, %s130
      %s145 = sphi 0, %s131
      %s151 = sphi 0, %s153
      %s154 = sphi 0, %s151
      %s155 = sphi 0, %s154
      %s171 = sphi 0, %s155
      %s179 = sphi 0, %s181
      %s182 = sphi 0, %s179
      %s183 = sphi 0, %s182
      %s199 = sphi 0, %s183
    $region4: #{tpu_custom_call.1} parent=1 // loop_header_branch
      %22 = sbr.rel (%p20) target = $region8
    $region5: #{tpu_custom_call.1} parent=1 // loop_body
      %s24 = ssub.s32 %s19, 1
      %s25 = ssub.s32 %s19, 2
      %s32 = sadd.s32 1, %s27
      %p33 = scmp.ge.s32.totalorder %s32, 1
      %s34 = scalar_select %p33, 0, %s32
      %s35 = sadd.s32 1, %s26
      %s36 = scalar_select %p33, %s35, %s26
      %p37 = scmp.ge.s32.totalorder %s36, 2
      %s38 = scalar_select %p37, 0, %s36
      %s39 = ssub.s32 %s26, %s38
      %p40 = scmp.eq.s32.totalorder %s39, 0
      %s42 = sadd.s32 %s41, 1
      %s43 = scalar_select %p40, %s41, %s42
      %p46 = pneg %p40
      %p47 = scmp.eq.s32.totalorder %s19, 1
      %p48 = por %p46, %p47
      %p49 = scmp.ne.s32.totalorder %s41, %s44
      %p50 = scmp.eq.s32.totalorder %s19, 0
      %p51 = por %p49, %p50
      %p52 = scmp.ne.s32.totalorder %s41, %s44
      %p53 = scmp.eq.s32.totalorder %s24, 1
      %p54 = por %p52, %p53
      %p55 = scmp.ne.s32.totalorder %s44, %s45
      %p56 = scmp.eq.s32.totalorder %s24, 0
      %p57 = por %p55, %p56
      %p58 = scmp.ne.s32.totalorder %s44, %s45
      %p59 = scmp.eq.s32.totalorder %s25, 1
      %p60 = por %p58, %p59
      %p62 = scmp.ne.s32.totalorder %s45, %s61
      %p63 = scmp.eq.s32.totalorder %s25, 0
      %p64 = por %p62, %p63
      %s66 = sadd.s32 %s65, 1
      %p69 = scmp.eq.s32.totalorder %s19, 1
      %p70 = scmp.ne.s32.totalorder %s65, %s67
      %p71 = scmp.eq.s32.totalorder %s19, 0
      %p72 = por %p70, %p71
      %p73 = scmp.ne.s32.totalorder %s65, %s67
      %p74 = scmp.eq.s32.totalorder %s24, 1
      %p75 = por %p73, %p74
      %p76 = scmp.ne.s32.totalorder %s67, %s68
      %p77 = scmp.eq.s32.totalorder %s24, 0
      %p78 = por %p76, %p77
      %p79 = scmp.ne.s32.totalorder %s67, %s68
      %p80 = scmp.eq.s32.totalorder %s25, 1
      %p81 = por %p79, %p80
      %p83 = scmp.ne.s32.totalorder %s68, %s82
      %p84 = scmp.eq.s32.totalorder %s25, 0
      %p85 = por %p83, %p84
      %s87 = sadd.s32 %s86, 1
      %p90 = scmp.eq.s32.totalorder %s19, 1
      %p91 = scmp.ne.s32.totalorder %s86, %s88
      %p92 = scmp.eq.s32.totalorder %s19, 0
      %p93 = por %p91, %p92
      %p94 = scmp.ne.s32.totalorder %s86, %s88
      %p95 = scmp.eq.s32.totalorder %s24, 1
      %p96 = por %p94, %p95
      %p97 = scmp.ne.s32.totalorder %s88, %s89
      %p98 = scmp.eq.s32.totalorder %s24, 0
      %p99 = por %p97, %p98
      %p100 = scmp.ne.s32.totalorder %s88, %s89
      %p101 = scmp.eq.s32.totalorder %s25, 1
      %p102 = por %p100, %p101
      %p104 = scmp.ne.s32.totalorder %s89, %s103
      %p105 = scmp.eq.s32.totalorder %s25, 0
      %p106 = por %p104, %p105
      %s108 = sadd.s32 %s107, 1
      %p111 = scmp.eq.s32.totalorder %s19, 1
      %p112 = scmp.ne.s32.totalorder %s107, %s109
      %p113 = scmp.eq.s32.totalorder %s19, 0
      %p114 = por %p112, %p113
      %p115 = scmp.ne.s32.totalorder %s107, %s109
      %p116 = scmp.eq.s32.totalorder %s24, 1
      %p117 = por %p115, %p116
      %p118 = scmp.ne.s32.totalorder %s109, %s110
      %p119 = scmp.eq.s32.totalorder %s24, 0
      %p120 = por %p118, %p119
      %p121 = scmp.ne.s32.totalorder %s109, %s110
      %p122 = scmp.eq.s32.totalorder %s25, 1
      %p123 = por %p121, %p122
      %p125 = scmp.ne.s32.totalorder %s110, %s124
      %p126 = scmp.eq.s32.totalorder %s25, 0
      %p127 = por %p125, %p126
      %s129 = sadd.s32 %s128, 1
      %p132 = scmp.eq.s32.totalorder %s19, 1
      %p133 = scmp.ne.s32.totalorder %s128, %s130
      %p134 = scmp.eq.s32.totalorder %s19, 0
      %p135 = por %p133, %p134
      %p136 = scmp.ne.s32.totalorder %s128, %s130
      %p137 = scmp.eq.s32.totalorder %s24, 1
      %p138 = por %p136, %p137
      %p139 = scmp.ne.s32.totalorder %s130, %s131
      %p140 = scmp.eq.s32.totalorder %s24, 0
      %p141 = por %p139, %p140
      %p142 = scmp.ne.s32.totalorder %s130, %s131
      %p143 = scmp.eq.s32.totalorder %s25, 1
      %p144 = por %p142, %p143
      %p146 = scmp.ne.s32.totalorder %s131, %s145
      %p147 = scmp.eq.s32.totalorder %s25, 0
      %p148 = por %p146, %p147
      %s149 = ssub.s32 %s26, %s38
      %p150 = scmp.eq.s32.totalorder %s149, 0
      %s152 = sadd.s32 %s151, 1
      %s153 = scalar_select %p150, %s151, %s152
      %p156 = pneg %p150
      %p157 = scmp.eq.s32.totalorder %s19, 1
      %p158 = por %p156, %p157
      %p159 = scmp.ne.s32.totalorder %s151, %s154
      %p160 = scmp.eq.s32.totalorder %s19, 0
      %p161 = por %p159, %p160
      %p162 = scmp.ne.s32.totalorder %s151, %s154
      %p163 = scmp.eq.s32.totalorder %s24, 1
      %p164 = por %p162, %p163
      %p165 = scmp.ne.s32.totalorder %s154, %s155
      %p166 = scmp.eq.s32.totalorder %s24, 0
      %p167 = por %p165, %p166
      %p168 = scmp.ne.s32.totalorder %s154, %s155
      %p169 = scmp.eq.s32.totalorder %s25, 1
      %p170 = por %p168, %p169
      %p172 = scmp.ne.s32.totalorder %s155, %s171
      %p173 = scmp.eq.s32.totalorder %s25, 0
      %p174 = por %p172, %p173
      %s175 = ssub.s32 %s26, %s38
      %s176 = ssub.s32 %s27, %s34
      %s177 = sor.u32 %s175, %s176
      %p178 = scmp.eq.s32.totalorder %s177, 0
      %s180 = sadd.s32 %s179, 1
      %s181 = scalar_select %p178, %s179, %s180
      %p184 = pneg %p178
      %p185 = scmp.eq.s32.totalorder %s19, 1
      %p186 = por %p184, %p185
      %p187 = scmp.ne.s32.totalorder %s179, %s182
      %p188 = scmp.eq.s32.totalorder %s19, 0
      %p189 = por %p187, %p188
      %p190 = scmp.ne.s32.totalorder %s179, %s182
      %p191 = scmp.eq.s32.totalorder %s24, 1
      %p192 = por %p190, %p191
      %p193 = scmp.ne.s32.totalorder %s182, %s183
      %p194 = scmp.eq.s32.totalorder %s24, 0
      %p195 = por %p193, %p194
      %p196 = scmp.ne.s32.totalorder %s182, %s183
      %p197 = scmp.eq.s32.totalorder %s25, 1
      %p198 = por %p196, %p197
      %p200 = scmp.ne.s32.totalorder %s183, %s199
      %p201 = scmp.eq.s32.totalorder %s25, 0
      %p202 = por %p200, %p201
      %p203 = scmp.le.s32.totalorder 1, %s19
      %p204 = scmp.lt.s32.totalorder %s19, 3
      %p205 = pnand %p203, %p204
      %p206 = pneg %p205
      // Predicated region
      $region9: #{tpu_custom_call.1} parent=5 // pred_check
        _
      $region10: #{tpu_custom_call.1} parent=5 // pred_check_branch
        %208 = sbr.rel (%p205) target = $region12
      $region11: #{tpu_custom_call.1} parent=5 // pred_region
        %s209 = ssub.s32 %s19, 1
        // Predicated region
        $region13: #{tpu_custom_call.1} parent=11 // pred_check
          %p210 = pneg %p78
        $region14: #{tpu_custom_call.1} parent=11 // pred_check_branch
          %212 = sbr.rel (%p210) target = $region16
        $region15: #{tpu_custom_call.1} parent=11 // pred_region
          %s214 = ssub.s32 512, 512
          %215 = vsyncadd [#allocation6], %s214
          %s216 = sshll.u32 [#allocation5], 4
          %s217 = int_to_ptr.vmem [resolvable:$true] %s216
          %222 = dma.hbm_to_vmem [thread:$0]  %s1, 512, %s217, [#allocation6], 128, 128, 8
        $region16: #{tpu_custom_call.1} parent=11 // pred_fallthru
          _
        // Predicated region
        $region17: #{tpu_custom_call.1} parent=11 // pred_check
          %p223 = pneg %p99
        $region18: #{tpu_custom_call.1} parent=11 // pred_check_branch
          %225 = sbr.rel (%p223) target = $region20
        $region19: #{tpu_custom_call.1} parent=11 // pred_region
          _
        $region20: #{tpu_custom_call.1} parent=11 // pred_fallthru
          _
        // Predicated region
        $region21: #{tpu_custom_call.1} parent=11 // pred_check
          %p226 = pneg %p120
        $region22: #{tpu_custom_call.1} parent=11 // pred_check_branch
          %228 = sbr.rel (%p226) target = $region24
        $region23: #{tpu_custom_call.1} parent=11 // pred_region
          _
        $region24: #{tpu_custom_call.1} parent=11 // pred_fallthru
          _
        // Predicated region
        $region25: #{tpu_custom_call.1} parent=11 // pred_check
          %p229 = pneg %p141
        $region26: #{tpu_custom_call.1} parent=11 // pred_check_branch
          %231 = sbr.rel (%p229) target = $region28
        $region27: #{tpu_custom_call.1} parent=11 // pred_region
          _
        $region28: #{tpu_custom_call.1} parent=11 // pred_fallthru
          _
      $region12: #{tpu_custom_call.1} parent=5 // pred_fallthru
        _
      %p232 = scmp.lt.s32.totalorder %s19, 2
      // Predicated region
      $region29: #{tpu_custom_call.1} parent=5 // pred_check
        %p233 = pneg %p232
      $region30: #{tpu_custom_call.1} parent=5 // pred_check_branch
        %235 = sbr.rel (%p233) target = $region32
      $region31: #{tpu_custom_call.1} parent=5 // pred_region
        // Predicated region
        $region33: #{tpu_custom_call.1} parent=31 // pred_check
          %p236 = pneg %p51
        $region34: #{tpu_custom_call.1} parent=31 // pred_check_branch
          %238 = sbr.rel (%p236) target = $region36
        $region35: #{tpu_custom_call.1} parent=31 // pred_region
          %s239 = sand.u32 %s41, 1
          %s240 = scalar_lea.sflag [#allocation3], %s239
          %s241 = sand.u32 %s41, 1
          %s242 = smul.addr %s241, 16
          %s243 = scalar_lea.vmem [#allocation2], %s242
          %s245 = ssub.s32 256, 256
          %246 = vsyncadd %s240, %s245
          %s247 = smul.addr %s26, 2
          %s248 = smul.addr %s247, 128
          %s249 = scalar_lea.hbm %s0, %s248
          %s250 = sshll.u32 %s243, 4
          %s251 = int_to_ptr.vmem [resolvable:$true] %s250
          %256 = dma.hbm_to_vmem [thread:$0]  %s249, 256, %s251, %s240, 128, 128, 8
        $region36: #{tpu_custom_call.1} parent=31 // pred_fallthru
          _
        // Predicated region
        $region37: #{tpu_custom_call.1} parent=31 // pred_check
          %p257 = pneg %p161
        $region38: #{tpu_custom_call.1} parent=31 // pred_check_branch
          %259 = sbr.rel (%p257) target = $region40
        $region39: #{tpu_custom_call.1} parent=31 // pred_region
          %p260 = scmp.lt.s32.totalorder %s26, 1
          %s261 = scalar_select %p260, %s26, 1
          %s262 = scalar_lea.vmem %s5, %s261
        $region40: #{tpu_custom_call.1} parent=31 // pred_fallthru
          _
      $region32: #{tpu_custom_call.1} parent=5 // pred_fallthru
        _
      %p263 = scmp.le.s32.totalorder 1, %s19
      %p264 = scmp.lt.s32.totalorder %s19, 3
      %p265 = pnand %p263, %p264
      %p266 = pneg %p265
      // Predicated region
      $region41: #{tpu_custom_call.1} parent=5 // pred_check
        _
      $region42: #{tpu_custom_call.1} parent=5 // pred_check_branch
        %268 = sbr.rel (%p265) target = $region44
      $region43: #{tpu_custom_call.1} parent=5 // pred_region
        %s269 = ssub.s32 %s19, 1
        %s270 = sand.u32 %s44, 1
        %s271 = scalar_lea.sflag [#allocation3], %s270
        %s272 = sand.u32 %s44, 1
        %s273 = smul.addr %s272, 16
        %s274 = scalar_lea.vmem [#allocation2], %s273
        // Predicated region
        $region45: #{tpu_custom_call.1} parent=43 // pred_check
          %p275 = pneg %p57
        $region46: #{tpu_custom_call.1} parent=43 // pred_check_branch
          %277 = sbr.rel (%p275) target = $region48
        $region47: #{tpu_custom_call.1} parent=43 // pred_region
          %278 = dma.done %s271, 256
        $region48: #{tpu_custom_call.1} parent=43 // pred_fallthru
          _
        // Predicated region
        $region49: #{tpu_custom_call.1} parent=43 // pred_check
          %p279 = pneg %p78
        $region50: #{tpu_custom_call.1} parent=43 // pred_check_branch
          %281 = sbr.rel (%p279) target = $region52
        $region51: #{tpu_custom_call.1} parent=43 // pred_region
          %282 = dma.done [#allocation6], 512
        $region52: #{tpu_custom_call.1} parent=43 // pred_fallthru
          _
        %s283 = sand.u32 %s44, 1
        %s284 = scalar_lea.sflag [#allocation3], %s283
        %s285 = sand.u32 %s44, 1
        %s286 = smul.addr %s285, 16
        %s287 = scalar_lea.vmem [#allocation2], %s286
        %p288 = pneg %p57
        %p289 = pneg %p54
        %p290 = pneg %p78
        %p291 = pneg %p75
        %p292 = pneg %p99
        %p293 = pneg %p96
        %p294 = pneg %p120
        %p295 = pneg %p117
        %p296 = pneg %p141
        %p297 = pneg %p138
        %p298 = scmp.lt.s32.totalorder %s28, 1
        %s299 = scalar_select %p298, %s28, 1
        %s300 = scalar_lea.vmem %s5, %s299
        %p301 = pneg %p167
        %p302 = pneg %p164
        %p303 = pneg %p195
        %p304 = pneg %p192
        %s305 = sand.u32 %s182, 1
        %s306 = scalar_lea.sflag [#allocation4], %s305
        %s307 = sand.u32 %s182, 1
        %s308 = smul.addr %s307, 16
        %s309 = scalar_lea.vmem [#allocation7], %s308
        %p310 = scmp.lt.s32.totalorder %s28, 1
        %s311 = scalar_select %p310, %s28, 1
        %s312 = scalar_lea.vmem %s5, %s311
        %s313 = smul.u32 2, %s29
        %v314 = vld [vmem:[%s274] sm:$0xff]
        %v315 = vld [vmem:[%s274 + $0x8] sm:$0xff]
        %v316 = vld [vmem:[%s4] sm:$0xff]
        %v317 = vld [vmem:[%s4 + $0x8] sm:$0xff]
        %v318 = vld [vmem:[#allocation5] sm:$0xff]
        %v319 = vld [vmem:[#allocation5 + $0x8] sm:$0xff]
        %v320 = vld [vmem:[#allocation5 + $0x10] sm:$0xff]
        %v321 = vld [vmem:[#allocation5 + $0x18] sm:$0xff]
        %vm322 = vcmask 261120
        %v324 = vsel %vm322, %v314, 0
        %v327 = vsel %vm322, %v315, 0
        %329 = vmatprep.subr.mxu0 0.0
        %330 = vmatpush1.msra.mxu0 %v318
        %331 = vmatprep.subr.mxu0 0.0
        %332 = vmatpush1.msra.mxu0 %v319
        %333 = vmatprep.subr.mxu0 0.0
        %334 = vmatpush1.msra.mxu0 %v320
        %335 = vmatprep.subr.mxu0 0.0
        %336 = vmatpush1.msra.mxu0 %v321
        %337 = vmatprep.subr.mxu0 0.0
        %338 = vmatpush1.msra.mxu0 0.0
        %339 = vmatprep.subr.mxu0 0.0
        %340 = vmatpush1.msra.mxu0 0.0
        %341 = vmatprep.subr.mxu0 0.0
        %342 = vmatpush1.msra.mxu0 0.0
        %343 = vmatprep.subr.mxu0 0.0
        %344 = vmatpush1.msra.mxu0 0.0
        %345 = vmatprep.subr.mxu0 0.0
        %346 = vmatpush1.msra.mxu0 0.0
        %347 = vmatprep.subr.mxu0 0.0
        %348 = vmatpush1.msra.mxu0 0.0
        %349 = vmatprep.subr.mxu0 0.0
        %350 = vmatpush1.msra.mxu0 0.0
        %351 = vmatprep.subr.mxu0 0.0
        %352 = vmatpush1.msra.mxu0 0.0
        %353 = vmatprep.subr.mxu0 0.0
        %354 = vmatpush1.msra.mxu0 0.0
        %355 = vmatprep.subr.mxu0 0.0
        %356 = vmatpush1.msra.mxu0 0.0
        %357 = vmatprep.subr.mxu0 0.0
        %358 = vmatpush1.msra.mxu0 0.0
        %359 = vmatprep.subr.mxu0 0.0
        %360 = vmatpush1.msra.mxu0 0.0
        %361 = vmatprep.subr.mxu0 0.0
        %362 = vmatpush1.msra.mxu0 0.0
        %363 = vmatprep.subr.mxu0 0.0
        %364 = vmatpush1.msra.mxu0 0.0
        %365 = vmatprep.subr.mxu0 0.0
        %366 = vmatpush1.msra.mxu0 0.0
        %367 = vmatprep.subr.mxu0 0.0
        %368 = vmatpush1.msra.mxu0 0.0
        %369 = vmatprep.subr.mxu0 0.0
        %370 = vmatpush1.msra.mxu0 0.0
        %371 = vmatprep.subr.mxu0 0.0
        %372 = vmatpush1.msra.mxu0 0.0
        %373 = vmatprep.subr.mxu0 0.0
        %374 = vmatpush1.msra.mxu0 0.0
        %375 = vmatprep.subr.mxu0 0.0
        %376 = vmatpush1.msra.mxu0 0.0
        %377 = vmatprep.subr.mxu0 0.0
        %378 = vmatpush1.msra.mxu0 0.0
        %379 = vmatprep.subr.mxu0 0.0
        %380 = vmatpush1.msra.mxu0 0.0
        %381 = vmatprep.subr.mxu0 0.0
        %382 = vmatpush1.msra.mxu0 0.0
        %383 = vmatprep.subr.mxu0 0.0
        %384 = vmatpush1.msra.mxu0 0.0
        %385 = vmatprep.subr.mxu0 0.0
        %386 = vmatpush1.msra.mxu0 0.0
        %387 = vmatprep.subr.mxu0 0.0
        %388 = vmatpush1.msra.mxu0 0.0
        %389 = vmatprep.subr.mxu0 0.0
        %390 = vmatpush1.msra.mxu0 0.0
        %391 = vmatprep.subr.mxu0 0.0
        %392 = vmatpush1.msra.mxu0 0.0
        %393 = vmatprep.mubr.f32.mxu0 0.0
        %394 = vmatmul.mubr.f32.gmra.mrb[0].mxu0 %v324
        %v395 = vpop.f32.mrb[0].mxu0
        %v396 = vadd.f32 0.0, %v395
        %v397 = vpop.f32.mrb[0].mxu0
        %398 = vmatprep.mubr.f32.mxu0 0.0
        %399 = vmatmul.mubr.f32.gmra.mrb[0].mxu0 %v327
        %v400 = vpop.f32.mrb[0].mxu0
        %v401 = vadd.f32 0.0, %v400
        %v402 = vpop.f32.mrb[0].mxu0
        %403 = vdwg.mxu0
        %408 = vrot.lane.b32.xlu0 %v318, 96
        %v409 = vpop.permute.xlu0 %408
        %410 = vrot.lane.b32.xlu0 %v319, 96
        %v411 = vpop.permute.xlu0 %410
        %412 = vrot.lane.b32.xlu0 %v320, 96
        %v413 = vpop.permute.xlu0 %412
        %414 = vrot.lane.b32.xlu0 %v321, 96
        %v415 = vpop.permute.xlu0 %414
        %420 = vmatprep.subr.mxu0 0.0
        %421 = vmatpush1.msra.mxu0 %v409
        %422 = vmatprep.subr.mxu0 0.0
        %423 = vmatpush1.msra.mxu0 %v411
        %424 = vmatprep.subr.mxu0 0.0
        %425 = vmatpush1.msra.mxu0 %v413
        %426 = vmatprep.subr.mxu0 0.0
        %427 = vmatpush1.msra.mxu0 %v415
        %428 = vmatprep.subr.mxu0 0.0
        %429 = vmatpush1.msra.mxu0 0.0
        %430 = vmatprep.subr.mxu0 0.0
        %431 = vmatpush1.msra.mxu0 0.0
        %432 = vmatprep.subr.mxu0 0.0
        %433 = vmatpush1.msra.mxu0 0.0
        %434 = vmatprep.subr.mxu0 0.0
        %435 = vmatpush1.msra.mxu0 0.0
        %436 = vmatprep.subr.mxu0 0.0
        %437 = vmatpush1.msra.mxu0 0.0
        %438 = vmatprep.subr.mxu0 0.0
        %439 = vmatpush1.msra.mxu0 0.0
        %440 = vmatprep.subr.mxu0 0.0
        %441 = vmatpush1.msra.mxu0 0.0
        %442 = vmatprep.subr.mxu0 0.0
        %443 = vmatpush1.msra.mxu0 0.0
        %444 = vmatprep.subr.mxu0 0.0
        %445 = vmatpush1.msra.mxu0 0.0
        %446 = vmatprep.subr.mxu0 0.0
        %447 = vmatpush1.msra.mxu0 0.0
        %448 = vmatprep.subr.mxu0 0.0
        %449 = vmatpush1.msra.mxu0 0.0
        %450 = vmatprep.subr.mxu0 0.0
        %451 = vmatpush1.msra.mxu0 0.0
        %452 = vmatprep.subr.mxu0 0.0
        %453 = vmatpush1.msra.mxu0 0.0
        %454 = vmatprep.subr.mxu0 0.0
        %455 = vmatpush1.msra.mxu0 0.0
        %456 = vmatprep.subr.mxu0 0.0
        %457 = vmatpush1.msra.mxu0 0.0
        %458 = vmatprep.subr.mxu0 0.0
        %459 = vmatpush1.msra.mxu0 0.0
        %460 = vmatprep.subr.mxu0 0.0
        %461 = vmatpush1.msra.mxu0 0.0
        %462 = vmatprep.subr.mxu0 0.0
        %463 = vmatpush1.msra.mxu0 0.0
        %464 = vmatprep.subr.mxu0 0.0
        %465 = vmatpush1.msra.mxu0 0.0
        %466 = vmatprep.subr.mxu0 0.0
        %467 = vmatpush1.msra.mxu0 0.0
        %468 = vmatprep.subr.mxu0 0.0
        %469 = vmatpush1.msra.mxu0 0.0
        %470 = vmatprep.subr.mxu0 0.0
        %471 = vmatpush1.msra.mxu0 0.0
        %472 = vmatprep.subr.mxu0 0.0
        %473 = vmatpush1.msra.mxu0 0.0
        %474 = vmatprep.subr.mxu0 0.0
        %475 = vmatpush1.msra.mxu0 0.0
        %476 = vmatprep.subr.mxu0 0.0
        %477 = vmatpush1.msra.mxu0 0.0
        %478 = vmatprep.subr.mxu0 0.0
        %479 = vmatpush1.msra.mxu0 0.0
        %480 = vmatprep.subr.mxu0 0.0
        %481 = vmatpush1.msra.mxu0 0.0
        %482 = vmatprep.subr.mxu0 0.0
        %483 = vmatpush1.msra.mxu0 0.0
        %484 = vmatprep.mubr.f32.mxu0 0.0
        %485 = vmatmul.mubr.f32.gmra.mrb[0].mxu0 %v324
        %v486 = vpop.f32.mrb[0].mxu0
        %v487 = vadd.f32 0.0, %v486
        %v488 = vpop.f32.mrb[0].mxu0
        %489 = vmatprep.mubr.f32.mxu0 0.0
        %490 = vmatmul.mubr.f32.gmra.mrb[0].mxu0 %v327
        %v491 = vpop.f32.mrb[0].mxu0
        %v492 = vadd.f32 0.0, %v491
        %v493 = vpop.f32.mrb[0].mxu0
        %494 = vdwg.mxu0
        %v495 = vld [vmem:[%s2] sm:$0x1]
        %v497 = vlaneseq
        %v498 = vshrl.u32 %v497, 7
        %v499 = vsub.s32 0, %v498
        %v500 = vrot.slane %v495, %v499
        %v502 = vadd.f32 %v396, %v500
        %v503 = vadd.f32 %v401, %v500
        %v504 = vld [vmem:[%s3] sm:$0x1]
        %v506 = vlaneseq
        %v507 = vshrl.u32 %v506, 7
        %v508 = vsub.s32 0, %v507
        %v509 = vrot.slane %v504, %v508
        %v511 = vadd.f32 %v396, %v509
        %v512 = vadd.f32 %v401, %v509
        %v513 = vld [vmem:[%s312] sm:$0x1]
        %516 = vrot.lane.b32.xlu0 %v316, 124
        %v517 = vpop.permute.xlu0 %516
        %518 = vrot.lane.b32.xlu0 %v317, 124
        %v519 = vpop.permute.xlu0 %518
        %v522 = vmul.f32 %v511, %v517
        %v523 = vmul.f32 %v512, %v519
        %524 = vrot.lane.b32.xlu0 %v316, 4
        %v525 = vpop.permute.xlu0 %524
        %526 = vrot.lane.b32.xlu0 %v317, 4
        %v527 = vpop.permute.xlu0 %526
        %v530 = vmul.f32 %v511, %v525
        %v531 = vmul.f32 %v512, %v527
        %534 = vrot.lane.b32.xlu0 %v530, 124
        %v535 = vpop.permute.xlu0 %534
        %536 = vrot.lane.b32.xlu0 %v531, 124
        %v537 = vpop.permute.xlu0 %536
        %v540 = vadd.f32 %v522, %v535
        %v541 = vadd.f32 %v523, %v537
        %v542 = vmul.f32 %v511, %v316
        %v543 = vmul.f32 %v512, %v317
        %546 = vrot.lane.b32.xlu0 %v542, 4
        %v547 = vpop.permute.xlu0 %546
        %548 = vrot.lane.b32.xlu0 %v543, 4
        %v549 = vpop.permute.xlu0 %548
        %v552 = vsub.f32 %v542, %v547
        %v553 = vsub.f32 %v543, %v549
        %556 = vrot.lane.b32.xlu0 %v540, 8
        %v557 = vpop.permute.xlu0 %556
        %558 = vrot.lane.b32.xlu0 %v541, 8
        %v559 = vpop.permute.xlu0 %558
        %564 = vrot.lane.b32.xlu0 %v552, 8
        %v565 = vpop.permute.xlu0 %564
        %566 = vrot.lane.b32.xlu0 %v553, 8
        %v567 = vpop.permute.xlu0 %566
        %vm570 = vcmask 64512
        %v571 = vsel %vm570, %v502, %v557
        %v572 = vsel %vm570, %v503, %v559
        %vm573 = vcmask 97280
        %v574 = vsel %vm573, %v571, %v565
        %v575 = vsel %vm573, %v572, %v567
        %576 = vrot.lane.b32.xlu0 %v316, 8
        %v577 = vpop.permute.xlu0 %576
        %578 = vrot.lane.b32.xlu0 %v317, 8
        %v579 = vpop.permute.xlu0 %578
        %v582 = vsel %vm570, %v314, %v577
        %v583 = vsel %vm570, %v315, %v579
        %v585 = vlaneseq
        %v586 = vshrl.u32 %v585, 7
        %v587 = vsub.s32 0, %v586
        %v588 = vrot.slane %v513, %v587
        %vm590 = vcmask 130048
        %v592 = vsel %vm590, %v574, 0
        %v595 = vsel %vm590, %v575, 0
        %v598 = vsel %vm590, %v582, 0
        %v601 = vsel %vm590, %v583, 0
        %603 = vmatprep.subr.mxu0 0.0
        %604 = vmatpush1.xpose.msra.mxu0 %v598
        %605 = vmatprep.subr.mxu0 0.0
        %606 = vmatpush1.xpose.msra.mxu0 %v601
        %607 = vmatprep.subr.mxu0 0.0
        %608 = vmatpush1.xpose.msra.mxu0 0.0
        %609 = vmatprep.subr.mxu0 0.0
        %610 = vmatpush1.xpose.msra.mxu0 0.0
        %611 = vmatprep.subr.mxu0 0.0
        %612 = vmatpush1.xpose.msra.mxu0 0.0
        %613 = vmatprep.subr.mxu0 0.0
        %614 = vmatpush1.xpose.msra.mxu0 0.0
        %615 = vmatprep.subr.mxu0 0.0
        %616 = vmatpush1.xpose.msra.mxu0 0.0
        %617 = vmatprep.subr.mxu0 0.0
        %618 = vmatpush1.xpose.msra.mxu0 0.0
        %619 = vmatprep.subr.mxu0 0.0
        %620 = vmatpush1.xpose.msra.mxu0 0.0
        %621 = vmatprep.subr.mxu0 0.0
        %622 = vmatpush1.xpose.msra.mxu0 0.0
        %623 = vmatprep.subr.mxu0 0.0
        %624 = vmatpush1.xpose.msra.mxu0 0.0
        %625 = vmatprep.subr.mxu0 0.0
        %626 = vmatpush1.xpose.msra.mxu0 0.0
        %627 = vmatprep.subr.mxu0 0.0
        %628 = vmatpush1.xpose.msra.mxu0 0.0
        %629 = vmatprep.subr.mxu0 0.0
        %630 = vmatpush1.xpose.msra.mxu0 0.0
        %631 = vmatprep.subr.mxu0 0.0
        %632 = vmatpush1.xpose.msra.mxu0 0.0
        %633 = vmatprep.subr.mxu0 0.0
        %634 = vmatpush1.xpose.msra.mxu0 0.0
        %635 = vmatprep.subr.mxu0 0.0
        %636 = vmatpush1.xpose.msra.mxu0 0.0
        %637 = vmatprep.subr.mxu0 0.0
        %638 = vmatpush1.xpose.msra.mxu0 0.0
        %639 = vmatprep.subr.mxu0 0.0
        %640 = vmatpush1.xpose.msra.mxu0 0.0
        %641 = vmatprep.subr.mxu0 0.0
        %642 = vmatpush1.xpose.msra.mxu0 0.0
        %643 = vmatprep.subr.mxu0 0.0
        %644 = vmatpush1.xpose.msra.mxu0 0.0
        %645 = vmatprep.subr.mxu0 0.0
        %646 = vmatpush1.xpose.msra.mxu0 0.0
        %647 = vmatprep.subr.mxu0 0.0
        %648 = vmatpush1.xpose.msra.mxu0 0.0
        %649 = vmatprep.subr.mxu0 0.0
        %650 = vmatpush1.xpose.msra.mxu0 0.0
        %651 = vmatprep.subr.mxu0 0.0
        %652 = vmatpush1.xpose.msra.mxu0 0.0
        %653 = vmatprep.subr.mxu0 0.0
        %654 = vmatpush1.xpose.msra.mxu0 0.0
        %655 = vmatprep.subr.mxu0 0.0
        %656 = vmatpush1.xpose.msra.mxu0 0.0
        %657 = vmatprep.subr.mxu0 0.0
        %658 = vmatpush1.xpose.msra.mxu0 0.0
        %659 = vmatprep.subr.mxu0 0.0
        %660 = vmatpush1.xpose.msra.mxu0 0.0
        %661 = vmatprep.subr.mxu0 0.0
        %662 = vmatpush1.xpose.msra.mxu0 0.0
        %663 = vmatprep.subr.mxu0 0.0
        %664 = vmatpush1.xpose.msra.mxu0 0.0
        %665 = vmatprep.subr.mxu0 0.0
        %666 = vmatpush1.xpose.msra.mxu0 0.0
        %667 = vmatprep.mubr.f32.mxu0 0.0
        %668 = vmatmul.mubr.f32.gmra.mrb[0].mxu0 %v592
        %v669 = vpop.f32.mrb[0].mxu0
        %v670 = vadd.f32 %v588, %v669
        %v671 = vpop.f32.mrb[0].mxu0
        %672 = vmatprep.mubr.f32.mxu0 0.0
        %673 = vmatmul.mubr.f32.gmra.mrb[0].mxu0 %v595
        %v674 = vpop.f32.mrb[0].mxu0
        %v675 = vadd.f32 %v588, %v674
        %v676 = vpop.f32.mrb[0].mxu0
        %677 = vdwg.mxu0
        %v678 = vsel %vm590, %v670, -inf
        %679 = vmax.xlane.f32.xlu0 %v678
        %v680 = vpop.xlane.xlu0 %679
        %v681 = vsel %vm590, %v675, -inf
        %682 = vmax.xlane.f32.xlu0 %v681
        %v683 = vpop.xlane.xlu0 %682
        %v684 = vsub.f32 %v670, %v680
        %v685 = vsub.f32 %v675, %v683
        %v686 = vmul.f32 %v684, 1.442695
        %v687 = vpow.pop %v686
        %v688 = vmul.f32 %v685, 1.442695
        %v689 = vpow.pop %v688
        %v690 = vsel %vm590, %v687, 0.0
        %691 = vadd.xlane.f32.xlu0 %v690
        %v692 = vpop.xlane.xlu0 %691
        %v693 = vsel %vm590, %v689, 0.0
        %694 = vadd.xlane.f32.xlu0 %v693
        %v695 = vpop.xlane.xlu0 %694
        %v697 = vsel %vm590, %v687, 0
        %v700 = vsel %vm590, %v689, 0
        %702 = vmatprep.subr.mxu0 0.0
        %703 = vmatpush1.msra.mxu0 %v487
        %704 = vmatprep.subr.mxu0 0.0
        %705 = vmatpush1.msra.mxu0 %v492
        %706 = vmatprep.subr.mxu0 0.0
        %707 = vmatpush1.msra.mxu0 0.0
        %708 = vmatprep.subr.mxu0 0.0
        %709 = vmatpush1.msra.mxu0 0.0
        %710 = vmatprep.subr.mxu0 0.0
        %711 = vmatpush1.msra.mxu0 0.0
        %712 = vmatprep.subr.mxu0 0.0
        %713 = vmatpush1.msra.mxu0 0.0
        %714 = vmatprep.subr.mxu0 0.0
        %715 = vmatpush1.msra.mxu0 0.0
        %716 = vmatprep.subr.mxu0 0.0
        %717 = vmatpush1.msra.mxu0 0.0
        %718 = vmatprep.subr.mxu0 0.0
        %719 = vmatpush1.msra.mxu0 0.0
        %720 = vmatprep.subr.mxu0 0.0
        %721 = vmatpush1.msra.mxu0 0.0
        %722 = vmatprep.subr.mxu0 0.0
        %723 = vmatpush1.msra.mxu0 0.0
        %724 = vmatprep.subr.mxu0 0.0
        %725 = vmatpush1.msra.mxu0 0.0
        %726 = vmatprep.subr.mxu0 0.0
        %727 = vmatpush1.msra.mxu0 0.0
        %728 = vmatprep.subr.mxu0 0.0
        %729 = vmatpush1.msra.mxu0 0.0
        %730 = vmatprep.subr.mxu0 0.0
        %731 = vmatpush1.msra.mxu0 0.0
        %732 = vmatprep.subr.mxu0 0.0
        %733 = vmatpush1.msra.mxu0 0.0
        %734 = vmatprep.subr.mxu0 0.0
        %735 = vmatpush1.msra.mxu0 0.0
        %736 = vmatprep.subr.mxu0 0.0
        %737 = vmatpush1.msra.mxu0 0.0
        %738 = vmatprep.subr.mxu0 0.0
        %739 = vmatpush1.msra.mxu0 0.0
        %740 = vmatprep.subr.mxu0 0.0
        %741 = vmatpush1.msra.mxu0 0.0
        %742 = vmatprep.subr.mxu0 0.0
        %743 = vmatpush1.msra.mxu0 0.0
        %744 = vmatprep.subr.mxu0 0.0
        %745 = vmatpush1.msra.mxu0 0.0
        %746 = vmatprep.subr.mxu0 0.0
        %747 = vmatpush1.msra.mxu0 0.0
        %748 = vmatprep.subr.mxu0 0.0
        %749 = vmatpush1.msra.mxu0 0.0
        %750 = vmatprep.subr.mxu0 0.0
        %751 = vmatpush1.msra.mxu0 0.0
        %752 = vmatprep.subr.mxu0 0.0
        %753 = vmatpush1.msra.mxu0 0.0
        %754 = vmatprep.subr.mxu0 0.0
        %755 = vmatpush1.msra.mxu0 0.0
        %756 = vmatprep.subr.mxu0 0.0
        %757 = vmatpush1.msra.mxu0 0.0
        %758 = vmatprep.subr.mxu0 0.0
        %759 = vmatpush1.msra.mxu0 0.0
        %760 = vmatprep.subr.mxu0 0.0
        %761 = vmatpush1.msra.mxu0 0.0
        %762 = vmatprep.subr.mxu0 0.0
        %763 = vmatpush1.msra.mxu0 0.0
        %764 = vmatprep.subr.mxu0 0.0
        %765 = vmatpush1.msra.mxu0 0.0
        %766 = vmatprep.mubr.f32.mxu0 0.0
        %767 = vmatmul.mubr.f32.gmra.mrb[0].mxu0 %v697
        %v768 = vpop.f32.mrb[0].mxu0
        %v769 = vadd.f32 0.0, %v768
        %v770 = vpop.f32.mrb[0].mxu0
        %771 = vmatprep.mubr.f32.mxu0 0.0
        %772 = vmatmul.mubr.f32.gmra.mrb[0].mxu0 %v700
        %v773 = vpop.f32.mrb[0].mxu0
        %v774 = vadd.f32 0.0, %v773
        %v775 = vpop.f32.mrb[0].mxu0
        %776 = vdwg.mxu0
        %v777 = vrcp.pop %v692
        %v778 = vrcp.pop %v695
        %v779 = vmul.f32 %v769, %v777
        %v780 = vmul.f32 %v774, %v778
        %781 = vrot.lane.b32.xlu0 %v316, 12
        %v782 = vpop.permute.xlu0 %781
        %783 = vrot.lane.b32.xlu0 %v317, 12
        %v784 = vpop.permute.xlu0 %783
        %v787 = vmul.f32 %v511, %v782
        %v788 = vmul.f32 %v512, %v784
        %791 = vrot.lane.b32.xlu0 %v787, 124
        %v792 = vpop.permute.xlu0 %791
        %793 = vrot.lane.b32.xlu0 %v788, 124
        %v794 = vpop.permute.xlu0 %793
        %v797 = vadd.f32 %v530, %v792
        %v798 = vadd.f32 %v531, %v794
        %v799 = vmul.f32 %v511, %v577
        %v800 = vmul.f32 %v512, %v579
        %803 = vrot.lane.b32.xlu0 %v799, 4
        %v804 = vpop.permute.xlu0 %803
        %805 = vrot.lane.b32.xlu0 %v800, 4
        %v806 = vpop.permute.xlu0 %805
        %v809 = vsub.f32 %v799, %v804
        %v810 = vsub.f32 %v800, %v806
        %813 = vrot.lane.b32.xlu0 %v502, 120
        %v814 = vpop.permute.xlu0 %813
        %815 = vrot.lane.b32.xlu0 %v503, 120
        %v816 = vpop.permute.xlu0 %815
        %v819 = vsel %vm570, %v814, %v797
        %v820 = vsel %vm570, %v816, %v798
        %v821 = vsel %vm573, %v819, %v809
        %v822 = vsel %vm573, %v820, %v810
        %823 = vrot.lane.b32.xlu0 %v314, 120
        %v824 = vpop.permute.xlu0 %823
        %825 = vrot.lane.b32.xlu0 %v315, 120
        %v826 = vpop.permute.xlu0 %825
        %v829 = vsel %vm570, %v824, %v577
        %v830 = vsel %vm570, %v826, %v579
        %v832 = vsel %vm590, %v821, 0
        %v835 = vsel %vm590, %v822, 0
        %v838 = vsel %vm590, %v829, 0
        %v841 = vsel %vm590, %v830, 0
        %843 = vmatprep.subr.mxu0 0.0
        %844 = vmatpush1.xpose.msra.mxu0 %v838
        %845 = vmatprep.subr.mxu0 0.0
        %846 = vmatpush1.xpose.msra.mxu0 %v841
        %847 = vmatprep.subr.mxu0 0.0
        %848 = vmatpush1.xpose.msra.mxu0 0.0
        %849 = vmatprep.subr.mxu0 0.0
        %850 = vmatpush1.xpose.msra.mxu0 0.0
        %851 = vmatprep.subr.mxu0 0.0
        %852 = vmatpush1.xpose.msra.mxu0 0.0
        %853 = vmatprep.subr.mxu0 0.0
        %854 = vmatpush1.xpose.msra.mxu0 0.0
        %855 = vmatprep.subr.mxu0 0.0
        %856 = vmatpush1.xpose.msra.mxu0 0.0
        %857 = vmatprep.subr.mxu0 0.0
        %858 = vmatpush1.xpose.msra.mxu0 0.0
        %859 = vmatprep.subr.mxu0 0.0
        %860 = vmatpush1.xpose.msra.mxu0 0.0
        %861 = vmatprep.subr.mxu0 0.0
        %862 = vmatpush1.xpose.msra.mxu0 0.0
        %863 = vmatprep.subr.mxu0 0.0
        %864 = vmatpush1.xpose.msra.mxu0 0.0
        %865 = vmatprep.subr.mxu0 0.0
        %866 = vmatpush1.xpose.msra.mxu0 0.0
        %867 = vmatprep.subr.mxu0 0.0
        %868 = vmatpush1.xpose.msra.mxu0 0.0
        %869 = vmatprep.subr.mxu0 0.0
        %870 = vmatpush1.xpose.msra.mxu0 0.0
        %871 = vmatprep.subr.mxu0 0.0
        %872 = vmatpush1.xpose.msra.mxu0 0.0
        %873 = vmatprep.subr.mxu0 0.0
        %874 = vmatpush1.xpose.msra.mxu0 0.0
        %875 = vmatprep.subr.mxu0 0.0
        %876 = vmatpush1.xpose.msra.mxu0 0.0
        %877 = vmatprep.subr.mxu0 0.0
        %878 = vmatpush1.xpose.msra.mxu0 0.0
        %879 = vmatprep.subr.mxu0 0.0
        %880 = vmatpush1.xpose.msra.mxu0 0.0
        %881 = vmatprep.subr.mxu0 0.0
        %882 = vmatpush1.xpose.msra.mxu0 0.0
        %883 = vmatprep.subr.mxu0 0.0
        %884 = vmatpush1.xpose.msra.mxu0 0.0
        %885 = vmatprep.subr.mxu0 0.0
        %886 = vmatpush1.xpose.msra.mxu0 0.0
        %887 = vmatprep.subr.mxu0 0.0
        %888 = vmatpush1.xpose.msra.mxu0 0.0
        %889 = vmatprep.subr.mxu0 0.0
        %890 = vmatpush1.xpose.msra.mxu0 0.0
        %891 = vmatprep.subr.mxu0 0.0
        %892 = vmatpush1.xpose.msra.mxu0 0.0
        %893 = vmatprep.subr.mxu0 0.0
        %894 = vmatpush1.xpose.msra.mxu0 0.0
        %895 = vmatprep.subr.mxu0 0.0
        %896 = vmatpush1.xpose.msra.mxu0 0.0
        %897 = vmatprep.subr.mxu0 0.0
        %898 = vmatpush1.xpose.msra.mxu0 0.0
        %899 = vmatprep.subr.mxu0 0.0
        %900 = vmatpush1.xpose.msra.mxu0 0.0
        %901 = vmatprep.subr.mxu0 0.0
        %902 = vmatpush1.xpose.msra.mxu0 0.0
        %903 = vmatprep.subr.mxu0 0.0
        %904 = vmatpush1.xpose.msra.mxu0 0.0
        %905 = vmatprep.subr.mxu0 0.0
        %906 = vmatpush1.xpose.msra.mxu0 0.0
        %907 = vmatprep.mubr.f32.mxu0 0.0
        %908 = vmatmul.mubr.f32.gmra.mrb[0].mxu0 %v832
        %v909 = vpop.f32.mrb[0].mxu0
        %v910 = vadd.f32 %v588, %v909
        %v911 = vpop.f32.mrb[0].mxu0
        %912 = vmatprep.mubr.f32.mxu0 0.0
        %913 = vmatmul.mubr.f32.gmra.mrb[0].mxu0 %v835
        %v914 = vpop.f32.mrb[0].mxu0
        %v915 = vadd.f32 %v588, %v914
        %v916 = vpop.f32.mrb[0].mxu0
        %917 = vdwg.mxu0
        %v918 = vsel %vm590, %v910, -inf
        %919 = vmax.xlane.f32.xlu0 %v918
        %v920 = vpop.xlane.xlu0 %919
        %v921 = vsel %vm590, %v915, -inf
        %922 = vmax.xlane.f32.xlu0 %v921
        %v923 = vpop.xlane.xlu0 %922
        %v924 = vsub.f32 %v910, %v920
        %v925 = vsub.f32 %v915, %v923
        %v926 = vmul.f32 %v924, 1.442695
        %v927 = vpow.pop %v926
        %v928 = vmul.f32 %v925, 1.442695
        %v929 = vpow.pop %v928
        %v930 = vsel %vm590, %v927, 0.0
        %931 = vadd.xlane.f32.xlu0 %v930
        %v932 = vpop.xlane.xlu0 %931
        %v933 = vsel %vm590, %v929, 0.0
        %934 = vadd.xlane.f32.xlu0 %v933
        %v935 = vpop.xlane.xlu0 %934
        %938 = vrot.lane.b32.xlu0 %v487, 120
        %v939 = vpop.permute.xlu0 %938
        %940 = vrot.lane.b32.xlu0 %v492, 120
        %v941 = vpop.permute.xlu0 %940
        %v945 = vsel %vm590, %v927, 0
        %v948 = vsel %vm590, %v929, 0
        %950 = vmatprep.subr.mxu0 0.0
        %951 = vmatpush1.msra.mxu0 %v939
        %952 = vmatprep.subr.mxu0 0.0
        %953 = vmatpush1.msra.mxu0 %v941
        %954 = vmatprep.subr.mxu0 0.0
        %955 = vmatpush1.msra.mxu0 0.0
        %956 = vmatprep.subr.mxu0 0.0
        %957 = vmatpush1.msra.mxu0 0.0
        %958 = vmatprep.subr.mxu0 0.0
        %959 = vmatpush1.msra.mxu0 0.0
        %960 = vmatprep.subr.mxu0 0.0
        %961 = vmatpush1.msra.mxu0 0.0
        %962 = vmatprep.subr.mxu0 0.0
        %963 = vmatpush1.msra.mxu0 0.0
        %964 = vmatprep.subr.mxu0 0.0
        %965 = vmatpush1.msra.mxu0 0.0
        %966 = vmatprep.subr.mxu0 0.0
        %967 = vmatpush1.msra.mxu0 0.0
        %968 = vmatprep.subr.mxu0 0.0
        %969 = vmatpush1.msra.mxu0 0.0
        %970 = vmatprep.subr.mxu0 0.0
        %971 = vmatpush1.msra.mxu0 0.0
        %972 = vmatprep.subr.mxu0 0.0
        %973 = vmatpush1.msra.mxu0 0.0
        %974 = vmatprep.subr.mxu0 0.0
        %975 = vmatpush1.msra.mxu0 0.0
        %976 = vmatprep.subr.mxu0 0.0
        %977 = vmatpush1.msra.mxu0 0.0
        %978 = vmatprep.subr.mxu0 0.0
        %979 = vmatpush1.msra.mxu0 0.0
        %980 = vmatprep.subr.mxu0 0.0
        %981 = vmatpush1.msra.mxu0 0.0
        %982 = vmatprep.subr.mxu0 0.0
        %983 = vmatpush1.msra.mxu0 0.0
        %984 = vmatprep.subr.mxu0 0.0
        %985 = vmatpush1.msra.mxu0 0.0
        %986 = vmatprep.subr.mxu0 0.0
        %987 = vmatpush1.msra.mxu0 0.0
        %988 = vmatprep.subr.mxu0 0.0
        %989 = vmatpush1.msra.mxu0 0.0
        %990 = vmatprep.subr.mxu0 0.0
        %991 = vmatpush1.msra.mxu0 0.0
        %992 = vmatprep.subr.mxu0 0.0
        %993 = vmatpush1.msra.mxu0 0.0
        %994 = vmatprep.subr.mxu0 0.0
        %995 = vmatpush1.msra.mxu0 0.0
        %996 = vmatprep.subr.mxu0 0.0
        %997 = vmatpush1.msra.mxu0 0.0
        %998 = vmatprep.subr.mxu0 0.0
        %999 = vmatpush1.msra.mxu0 0.0
        %1000 = vmatprep.subr.mxu0 0.0
        %1001 = vmatpush1.msra.mxu0 0.0
        %1002 = vmatprep.subr.mxu0 0.0
        %1003 = vmatpush1.msra.mxu0 0.0
        %1004 = vmatprep.subr.mxu0 0.0
        %1005 = vmatpush1.msra.mxu0 0.0
        %1006 = vmatprep.subr.mxu0 0.0
        %1007 = vmatpush1.msra.mxu0 0.0
        %1008 = vmatprep.subr.mxu0 0.0
        %1009 = vmatpush1.msra.mxu0 0.0
        %1010 = vmatprep.subr.mxu0 0.0
        %1011 = vmatpush1.msra.mxu0 0.0
        %1012 = vmatprep.subr.mxu0 0.0
        %1013 = vmatpush1.msra.mxu0 0.0
        %1014 = vmatprep.mubr.f32.mxu0 0.0
        %1015 = vmatmul.mubr.f32.gmra.mrb[0].mxu0 %v945
        %v1016 = vpop.f32.mrb[0].mxu0
        %v1017 = vadd.f32 0.0, %v1016
        %v1018 = vpop.f32.mrb[0].mxu0
        %1019 = vmatprep.mubr.f32.mxu0 0.0
        %1020 = vmatmul.mubr.f32.gmra.mrb[0].mxu0 %v948
        %v1021 = vpop.f32.mrb[0].mxu0
        %v1022 = vadd.f32 0.0, %v1021
        %v1023 = vpop.f32.mrb[0].mxu0
        %1024 = vdwg.mxu0
        %v1025 = vrcp.pop %v932
        %v1026 = vrcp.pop %v935
        %v1027 = vmul.f32 %v1017, %v1025
        %v1028 = vmul.f32 %v1022, %v1026
        %1029 = vrot.lane.b32.xlu0 %v316, 20
        %v1030 = vpop.permute.xlu0 %1029
        %1031 = vrot.lane.b32.xlu0 %v317, 20
        %v1032 = vpop.permute.xlu0 %1031
        %v1035 = vmul.f32 %v511, %v1030
        %v1036 = vmul.f32 %v512, %v1032
        %1039 = vrot.lane.b32.xlu0 %v1035, 124
        %v1040 = vpop.permute.xlu0 %1039
        %1041 = vrot.lane.b32.xlu0 %v1036, 124
        %v1042 = vpop.permute.xlu0 %1041
        %v1045 = vadd.f32 %v787, %v1040
        %v1046 = vadd.f32 %v788, %v1042
        %1047 = vrot.lane.b32.xlu0 %v316, 16
        %v1048 = vpop.permute.xlu0 %1047
        %1049 = vrot.lane.b32.xlu0 %v317, 16
        %v1050 = vpop.permute.xlu0 %1049
        %v1053 = vmul.f32 %v511, %v1048
        %v1054 = vmul.f32 %v512, %v1050
        %1057 = vrot.lane.b32.xlu0 %v1053, 4
        %v1058 = vpop.permute.xlu0 %1057
        %1059 = vrot.lane.b32.xlu0 %v1054, 4
        %v1060 = vpop.permute.xlu0 %1059
        %v1063 = vsub.f32 %v1053, %v1058
        %v1064 = vsub.f32 %v1054, %v1060
        %1065 = vrot.lane.b32.xlu0 %v502, 112
        %v1066 = vpop.permute.xlu0 %1065
        %1067 = vrot.lane.b32.xlu0 %v503, 112
        %v1068 = vpop.permute.xlu0 %1067
        %1073 = vrot.lane.b32.xlu0 %v1045, 120
        %v1074 = vpop.permute.xlu0 %1073
        %1075 = vrot.lane.b32.xlu0 %v1046, 120
        %v1076 = vpop.permute.xlu0 %1075
        %1081 = vrot.lane.b32.xlu0 %v1063, 120
        %v1082 = vpop.permute.xlu0 %1081
        %1083 = vrot.lane.b32.xlu0 %v1064, 120
        %v1084 = vpop.permute.xlu0 %1083
        %v1087 = vsel %vm570, %v1066, %v1074
        %v1088 = vsel %vm570, %v1068, %v1076
        %v1089 = vsel %vm573, %v1087, %v1082
        %v1090 = vsel %vm573, %v1088, %v1084
        %1091 = vrot.lane.b32.xlu0 %v314, 112
        %v1092 = vpop.permute.xlu0 %1091
        %1093 = vrot.lane.b32.xlu0 %v315, 112
        %v1094 = vpop.permute.xlu0 %1093
        %v1097 = vsel %vm570, %v1092, %v577
        %v1098 = vsel %vm570, %v1094, %v579
        %v1100 = vsel %vm590, %v1089, 0
        %v1103 = vsel %vm590, %v1090, 0
        %v1106 = vsel %vm590, %v1097, 0
        %v1109 = vsel %vm590, %v1098, 0
        %1111 = vmatprep.subr.mxu0 0.0
        %1112 = vmatpush1.xpose.msra.mxu0 %v1106
        %1113 = vmatprep.subr.mxu0 0.0
        %1114 = vmatpush1.xpose.msra.mxu0 %v1109
        %1115 = vmatprep.subr.mxu0 0.0
        %1116 = vmatpush1.xpose.msra.mxu0 0.0
        %1117 = vmatprep.subr.mxu0 0.0
        %1118 = vmatpush1.xpose.msra.mxu0 0.0
        %1119 = vmatprep.subr.mxu0 0.0
        %1120 = vmatpush1.xpose.msra.mxu0 0.0
        %1121 = vmatprep.subr.mxu0 0.0
        %1122 = vmatpush1.xpose.msra.mxu0 0.0
        %1123 = vmatprep.subr.mxu0 0.0
        %1124 = vmatpush1.xpose.msra.mxu0 0.0
        %1125 = vmatprep.subr.mxu0 0.0
        %1126 = vmatpush1.xpose.msra.mxu0 0.0
        %1127 = vmatprep.subr.mxu0 0.0
        %1128 = vmatpush1.xpose.msra.mxu0 0.0
        %1129 = vmatprep.subr.mxu0 0.0
        %1130 = vmatpush1.xpose.msra.mxu0 0.0
        %1131 = vmatprep.subr.mxu0 0.0
        %1132 = vmatpush1.xpose.msra.mxu0 0.0
        %1133 = vmatprep.subr.mxu0 0.0
        %1134 = vmatpush1.xpose.msra.mxu0 0.0
        %1135 = vmatprep.subr.mxu0 0.0
        %1136 = vmatpush1.xpose.msra.mxu0 0.0
        %1137 = vmatprep.subr.mxu0 0.0
        %1138 = vmatpush1.xpose.msra.mxu0 0.0
        %1139 = vmatprep.subr.mxu0 0.0
        %1140 = vmatpush1.xpose.msra.mxu0 0.0
        %1141 = vmatprep.subr.mxu0 0.0
        %1142 = vmatpush1.xpose.msra.mxu0 0.0
        %1143 = vmatprep.subr.mxu0 0.0
        %1144 = vmatpush1.xpose.msra.mxu0 0.0
        %1145 = vmatprep.subr.mxu0 0.0
        %1146 = vmatpush1.xpose.msra.mxu0 0.0
        %1147 = vmatprep.subr.mxu0 0.0
        %1148 = vmatpush1.xpose.msra.mxu0 0.0
        %1149 = vmatprep.subr.mxu0 0.0
        %1150 = vmatpush1.xpose.msra.mxu0 0.0
        %1151 = vmatprep.subr.mxu0 0.0
        %1152 = vmatpush1.xpose.msra.mxu0 0.0
        %1153 = vmatprep.subr.mxu0 0.0
        %1154 = vmatpush1.xpose.msra.mxu0 0.0
        %1155 = vmatprep.subr.mxu0 0.0
        %1156 = vmatpush1.xpose.msra.mxu0 0.0
        %1157 = vmatprep.subr.mxu0 0.0
        %1158 = vmatpush1.xpose.msra.mxu0 0.0
        %1159 = vmatprep.subr.mxu0 0.0
        %1160 = vmatpush1.xpose.msra.mxu0 0.0
        %1161 = vmatprep.subr.mxu0 0.0
        %1162 = vmatpush1.xpose.msra.mxu0 0.0
        %1163 = vmatprep.subr.mxu0 0.0
        %1164 = vmatpush1.xpose.msra.mxu0 0.0
        %1165 = vmatprep.subr.mxu0 0.0
        %1166 = vmatpush1.xpose.msra.mxu0 0.0
        %1167 = vmatprep.subr.mxu0 0.0
        %1168 = vmatpush1.xpose.msra.mxu0 0.0
        %1169 = vmatprep.subr.mxu0 0.0
        %1170 = vmatpush1.xpose.msra.mxu0 0.0
        %1171 = vmatprep.subr.mxu0 0.0
        %1172 = vmatpush1.xpose.msra.mxu0 0.0
        %1173 = vmatprep.subr.mxu0 0.0
        %1174 = vmatpush1.xpose.msra.mxu0 0.0
        %1175 = vmatprep.mubr.f32.mxu0 0.0
        %1176 = vmatmul.mubr.f32.gmra.mrb[0].mxu0 %v1100
        %v1177 = vpop.f32.mrb[0].mxu0
        %v1178 = vadd.f32 %v588, %v1177
        %v1179 = vpop.f32.mrb[0].mxu0
        %1180 = vmatprep.mubr.f32.mxu0 0.0
        %1181 = vmatmul.mubr.f32.gmra.mrb[0].mxu0 %v1103
        %v1182 = vpop.f32.mrb[0].mxu0
        %v1183 = vadd.f32 %v588, %v1182
        %v1184 = vpop.f32.mrb[0].mxu0
        %1185 = vdwg.mxu0
        %v1186 = vsel %vm590, %v1178, -inf
        %1187 = vmax.xlane.f32.xlu0 %v1186
        %v1188 = vpop.xlane.xlu0 %1187
        %v1189 = vsel %vm590, %v1183, -inf
        %1190 = vmax.xlane.f32.xlu0 %v1189
        %v1191 = vpop.xlane.xlu0 %1190
        %v1192 = vsub.f32 %v1178, %v1188
        %v1193 = vsub.f32 %v1183, %v1191
        %v1194 = vmul.f32 %v1192, 1.442695
        %v1195 = vpow.pop %v1194
        %v1196 = vmul.f32 %v1193, 1.442695
        %v1197 = vpow.pop %v1196
        %v1198 = vsel %vm590, %v1195, 0.0
        %1199 = vadd.xlane.f32.xlu0 %v1198
        %v1200 = vpop.xlane.xlu0 %1199
        %v1201 = vsel %vm590, %v1197, 0.0
        %1202 = vadd.xlane.f32.xlu0 %v1201
        %v1203 = vpop.xlane.xlu0 %1202
        %1204 = vrot.lane.b32.xlu0 %v487, 112
        %v1205 = vpop.permute.xlu0 %1204
        %1206 = vrot.lane.b32.xlu0 %v492, 112
        %v1207 = vpop.permute.xlu0 %1206
        %v1211 = vsel %vm590, %v1195, 0
        %v1214 = vsel %vm590, %v1197, 0
        %1216 = vmatprep.subr.mxu0 0.0
        %1217 = vmatpush1.msra.mxu0 %v1205
        %1218 = vmatprep.subr.mxu0 0.0
        %1219 = vmatpush1.msra.mxu0 %v1207
        %1220 = vmatprep.subr.mxu0 0.0
        %1221 = vmatpush1.msra.mxu0 0.0
        %1222 = vmatprep.subr.mxu0 0.0
        %1223 = vmatpush1.msra.mxu0 0.0
        %1224 = vmatprep.subr.mxu0 0.0
        %1225 = vmatpush1.msra.mxu0 0.0
        %1226 = vmatprep.subr.mxu0 0.0
        %1227 = vmatpush1.msra.mxu0 0.0
        %1228 = vmatprep.subr.mxu0 0.0
        %1229 = vmatpush1.msra.mxu0 0.0
        %1230 = vmatprep.subr.mxu0 0.0
        %1231 = vmatpush1.msra.mxu0 0.0
        %1232 = vmatprep.subr.mxu0 0.0
        %1233 = vmatpush1.msra.mxu0 0.0
        %1234 = vmatprep.subr.mxu0 0.0
        %1235 = vmatpush1.msra.mxu0 0.0
        %1236 = vmatprep.subr.mxu0 0.0
        %1237 = vmatpush1.msra.mxu0 0.0
        %1238 = vmatprep.subr.mxu0 0.0
        %1239 = vmatpush1.msra.mxu0 0.0
        %1240 = vmatprep.subr.mxu0 0.0
        %1241 = vmatpush1.msra.mxu0 0.0
        %1242 = vmatprep.subr.mxu0 0.0
        %1243 = vmatpush1.msra.mxu0 0.0
        %1244 = vmatprep.subr.mxu0 0.0
        %1245 = vmatpush1.msra.mxu0 0.0
        %1246 = vmatprep.subr.mxu0 0.0
        %1247 = vmatpush1.msra.mxu0 0.0
        %1248 = vmatprep.subr.mxu0 0.0
        %1249 = vmatpush1.msra.mxu0 0.0
        %1250 = vmatprep.subr.mxu0 0.0
        %1251 = vmatpush1.msra.mxu0 0.0
        %1252 = vmatprep.subr.mxu0 0.0
        %1253 = vmatpush1.msra.mxu0 0.0
        %1254 = vmatprep.subr.mxu0 0.0
        %1255 = vmatpush1.msra.mxu0 0.0
        %1256 = vmatprep.subr.mxu0 0.0
        %1257 = vmatpush1.msra.mxu0 0.0
        %1258 = vmatprep.subr.mxu0 0.0
        %1259 = vmatpush1.msra.mxu0 0.0
        %1260 = vmatprep.subr.mxu0 0.0
        %1261 = vmatpush1.msra.mxu0 0.0
        %1262 = vmatprep.subr.mxu0 0.0
        %1263 = vmatpush1.msra.mxu0 0.0
        %1264 = vmatprep.subr.mxu0 0.0
        %1265 = vmatpush1.msra.mxu0 0.0
        %1266 = vmatprep.subr.mxu0 0.0
        %1267 = vmatpush1.msra.mxu0 0.0
        %1268 = vmatprep.subr.mxu0 0.0
        %1269 = vmatpush1.msra.mxu0 0.0
        %1270 = vmatprep.subr.mxu0 0.0
        %1271 = vmatpush1.msra.mxu0 0.0
        %1272 = vmatprep.subr.mxu0 0.0
        %1273 = vmatpush1.msra.mxu0 0.0
        %1274 = vmatprep.subr.mxu0 0.0
        %1275 = vmatpush1.msra.mxu0 0.0
        %1276 = vmatprep.subr.mxu0 0.0
        %1277 = vmatpush1.msra.mxu0 0.0
        %1278 = vmatprep.subr.mxu0 0.0
        %1279 = vmatpush1.msra.mxu0 0.0
        %1280 = vmatprep.mubr.f32.mxu0 0.0
        %1281 = vmatmul.mubr.f32.gmra.mrb[0].mxu0 %v1211
        %v1282 = vpop.f32.mrb[0].mxu0
        %v1283 = vadd.f32 0.0, %v1282
        %v1284 = vpop.f32.mrb[0].mxu0
        %1285 = vmatprep.mubr.f32.mxu0 0.0
        %1286 = vmatmul.mubr.f32.gmra.mrb[0].mxu0 %v1214
        %v1287 = vpop.f32.mrb[0].mxu0
        %v1288 = vadd.f32 0.0, %v1287
        %v1289 = vpop.f32.mrb[0].mxu0
        %1290 = vdwg.mxu0
        %v1291 = vrcp.pop %v1200
        %v1292 = vrcp.pop %v1203
        %v1293 = vmul.f32 %v1283, %v1291
        %v1294 = vmul.f32 %v1288, %v1292
        %1295 = vrot.lane.b32.xlu0 %v316, 28
        %v1296 = vpop.permute.xlu0 %1295
        %1297 = vrot.lane.b32.xlu0 %v317, 28
        %v1298 = vpop.permute.xlu0 %1297
        %v1301 = vmul.f32 %v511, %v1296
        %v1302 = vmul.f32 %v512, %v1298
        %1305 = vrot.lane.b32.xlu0 %v1301, 124
        %v1306 = vpop.permute.xlu0 %1305
        %1307 = vrot.lane.b32.xlu0 %v1302, 124
        %v1308 = vpop.permute.xlu0 %1307
        %v1311 = vadd.f32 %v1035, %v1306
        %v1312 = vadd.f32 %v1036, %v1308
        %1313 = vrot.lane.b32.xlu0 %v316, 24
        %v1314 = vpop.permute.xlu0 %1313
        %1315 = vrot.lane.b32.xlu0 %v317, 24
        %v1316 = vpop.permute.xlu0 %1315
        %v1319 = vmul.f32 %v511, %v1314
        %v1320 = vmul.f32 %v512, %v1316
        %1323 = vrot.lane.b32.xlu0 %v1319, 4
        %v1324 = vpop.permute.xlu0 %1323
        %1325 = vrot.lane.b32.xlu0 %v1320, 4
        %v1326 = vpop.permute.xlu0 %1325
        %v1329 = vsub.f32 %v1319, %v1324
        %v1330 = vsub.f32 %v1320, %v1326
        %1331 = vrot.lane.b32.xlu0 %v502, 104
        %v1332 = vpop.permute.xlu0 %1331
        %1333 = vrot.lane.b32.xlu0 %v503, 104
        %v1334 = vpop.permute.xlu0 %1333
        %1339 = vrot.lane.b32.xlu0 %v1311, 112
        %v1340 = vpop.permute.xlu0 %1339
        %1341 = vrot.lane.b32.xlu0 %v1312, 112
        %v1342 = vpop.permute.xlu0 %1341
        %1347 = vrot.lane.b32.xlu0 %v1329, 112
        %v1348 = vpop.permute.xlu0 %1347
        %1349 = vrot.lane.b32.xlu0 %v1330, 112
        %v1350 = vpop.permute.xlu0 %1349
        %v1353 = vsel %vm570, %v1332, %v1340
        %v1354 = vsel %vm570, %v1334, %v1342
        %v1355 = vsel %vm573, %v1353, %v1348
        %v1356 = vsel %vm573, %v1354, %v1350
        %1357 = vrot.lane.b32.xlu0 %v314, 104
        %v1358 = vpop.permute.xlu0 %1357
        %1359 = vrot.lane.b32.xlu0 %v315, 104
        %v1360 = vpop.permute.xlu0 %1359
        %v1363 = vsel %vm570, %v1358, %v577
        %v1364 = vsel %vm570, %v1360, %v579
        %v1366 = vsel %vm590, %v1355, 0
        %v1369 = vsel %vm590, %v1356, 0
        %v1372 = vsel %vm590, %v1363, 0
        %v1375 = vsel %vm590, %v1364, 0
        %1377 = vmatprep.subr.mxu0 0.0
        %1378 = vmatpush1.xpose.msra.mxu0 %v1372
        %1379 = vmatprep.subr.mxu0 0.0
        %1380 = vmatpush1.xpose.msra.mxu0 %v1375
        %1381 = vmatprep.subr.mxu0 0.0
        %1382 = vmatpush1.xpose.msra.mxu0 0.0
        %1383 = vmatprep.subr.mxu0 0.0
        %1384 = vmatpush1.xpose.msra.mxu0 0.0
        %1385 = vmatprep.subr.mxu0 0.0
        %1386 = vmatpush1.xpose.msra.mxu0 0.0
        %1387 = vmatprep.subr.mxu0 0.0
        %1388 = vmatpush1.xpose.msra.mxu0 0.0
        %1389 = vmatprep.subr.mxu0 0.0
        %1390 = vmatpush1.xpose.msra.mxu0 0.0
        %1391 = vmatprep.subr.mxu0 0.0
        %1392 = vmatpush1.xpose.msra.mxu0 0.0
        %1393 = vmatprep.subr.mxu0 0.0
        %1394 = vmatpush1.xpose.msra.mxu0 0.0
        %1395 = vmatprep.subr.mxu0 0.0
        %1396 = vmatpush1.xpose.msra.mxu0 0.0
        %1397 = vmatprep.subr.mxu0 0.0
        %1398 = vmatpush1.xpose.msra.mxu0 0.0
        %1399 = vmatprep.subr.mxu0 0.0
        %1400 = vmatpush1.xpose.msra.mxu0 0.0
        %1401 = vmatprep.subr.mxu0 0.0
        %1402 = vmatpush1.xpose.msra.mxu0 0.0
        %1403 = vmatprep.subr.mxu0 0.0
        %1404 = vmatpush1.xpose.msra.mxu0 0.0
        %1405 = vmatprep.subr.mxu0 0.0
        %1406 = vmatpush1.xpose.msra.mxu0 0.0
        %1407 = vmatprep.subr.mxu0 0.0
        %1408 = vmatpush1.xpose.msra.mxu0 0.0
        %1409 = vmatprep.subr.mxu0 0.0
        %1410 = vmatpush1.xpose.msra.mxu0 0.0
        %1411 = vmatprep.subr.mxu0 0.0
        %1412 = vmatpush1.xpose.msra.mxu0 0.0
        %1413 = vmatprep.subr.mxu0 0.0
        %1414 = vmatpush1.xpose.msra.mxu0 0.0
        %1415 = vmatprep.subr.mxu0 0.0
        %1416 = vmatpush1.xpose.msra.mxu0 0.0
        %1417 = vmatprep.subr.mxu0 0.0
        %1418 = vmatpush1.xpose.msra.mxu0 0.0
        %1419 = vmatprep.subr.mxu0 0.0
        %1420 = vmatpush1.xpose.msra.mxu0 0.0
        %1421 = vmatprep.subr.mxu0 0.0
        %1422 = vmatpush1.xpose.msra.mxu0 0.0
        %1423 = vmatprep.subr.mxu0 0.0
        %1424 = vmatpush1.xpose.msra.mxu0 0.0
        %1425 = vmatprep.subr.mxu0 0.0
        %1426 = vmatpush1.xpose.msra.mxu0 0.0
        %1427 = vmatprep.subr.mxu0 0.0
        %1428 = vmatpush1.xpose.msra.mxu0 0.0
        %1429 = vmatprep.subr.mxu0 0.0
        %1430 = vmatpush1.xpose.msra.mxu0 0.0
        %1431 = vmatprep.subr.mxu0 0.0
        %1432 = vmatpush1.xpose.msra.mxu0 0.0
        %1433 = vmatprep.subr.mxu0 0.0
        %1434 = vmatpush1.xpose.msra.mxu0 0.0
        %1435 = vmatprep.subr.mxu0 0.0
        %1436 = vmatpush1.xpose.msra.mxu0 0.0
        %1437 = vmatprep.subr.mxu0 0.0
        %1438 = vmatpush1.xpose.msra.mxu0 0.0
        %1439 = vmatprep.subr.mxu0 0.0
        %1440 = vmatpush1.xpose.msra.mxu0 0.0
        %1441 = vmatprep.mubr.f32.mxu0 0.0
        %1442 = vmatmul.mubr.f32.gmra.mrb[0].mxu0 %v1366
        %v1443 = vpop.f32.mrb[0].mxu0
        %v1444 = vadd.f32 %v588, %v1443
        %v1445 = vpop.f32.mrb[0].mxu0
        %1446 = vmatprep.mubr.f32.mxu0 0.0
        %1447 = vmatmul.mubr.f32.gmra.mrb[0].mxu0 %v1369
        %v1448 = vpop.f32.mrb[0].mxu0
        %v1449 = vadd.f32 %v588, %v1448
        %v1450 = vpop.f32.mrb[0].mxu0
        %1451 = vdwg.mxu0
        %v1452 = vsel %vm590, %v1444, -inf
        %1453 = vmax.xlane.f32.xlu0 %v1452
        %v1454 = vpop.xlane.xlu0 %1453
        %v1455 = vsel %vm590, %v1449, -inf
        %1456 = vmax.xlane.f32.xlu0 %v1455
        %v1457 = vpop.xlane.xlu0 %1456
        %v1458 = vsub.f32 %v1444, %v1454
        %v1459 = vsub.f32 %v1449, %v1457
        %v1460 = vmul.f32 %v1458, 1.442695
        %v1461 = vpow.pop %v1460
        %v1462 = vmul.f32 %v1459, 1.442695
        %v1463 = vpow.pop %v1462
        %v1464 = vsel %vm590, %v1461, 0.0
        %1465 = vadd.xlane.f32.xlu0 %v1464
        %v1466 = vpop.xlane.xlu0 %1465
        %v1467 = vsel %vm590, %v1463, 0.0
        %1468 = vadd.xlane.f32.xlu0 %v1467
        %v1469 = vpop.xlane.xlu0 %1468
        %1470 = vrot.lane.b32.xlu0 %v487, 104
        %v1471 = vpop.permute.xlu0 %1470
        %1472 = vrot.lane.b32.xlu0 %v492, 104
        %v1473 = vpop.permute.xlu0 %1472
        %v1477 = vsel %vm590, %v1461, 0
        %v1480 = vsel %vm590, %v1463, 0
        %1482 = vmatprep.subr.mxu0 0.0
        %1483 = vmatpush1.msra.mxu0 %v1471
        %1484 = vmatprep.subr.mxu0 0.0
        %1485 = vmatpush1.msra.mxu0 %v1473
        %1486 = vmatprep.subr.mxu0 0.0
        %1487 = vmatpush1.msra.mxu0 0.0
        %1488 = vmatprep.subr.mxu0 0.0
        %1489 = vmatpush1.msra.mxu0 0.0
        %1490 = vmatprep.subr.mxu0 0.0
        %1491 = vmatpush1.msra.mxu0 0.0
        %1492 = vmatprep.subr.mxu0 0.0
        %1493 = vmatpush1.msra.mxu0 0.0
        %1494 = vmatprep.subr.mxu0 0.0
        %1495 = vmatpush1.msra.mxu0 0.0
        %1496 = vmatprep.subr.mxu0 0.0
        %1497 = vmatpush1.msra.mxu0 0.0
        %1498 = vmatprep.subr.mxu0 0.0
        %1499 = vmatpush1.msra.mxu0 0.0
        %1500 = vmatprep.subr.mxu0 0.0
        %1501 = vmatpush1.msra.mxu0 0.0
        %1502 = vmatprep.subr.mxu0 0.0
        %1503 = vmatpush1.msra.mxu0 0.0
        %1504 = vmatprep.subr.mxu0 0.0
        %1505 = vmatpush1.msra.mxu0 0.0
        %1506 = vmatprep.subr.mxu0 0.0
        %1507 = vmatpush1.msra.mxu0 0.0
        %1508 = vmatprep.subr.mxu0 0.0
        %1509 = vmatpush1.msra.mxu0 0.0
        %1510 = vmatprep.subr.mxu0 0.0
        %1511 = vmatpush1.msra.mxu0 0.0
        %1512 = vmatprep.subr.mxu0 0.0
        %1513 = vmatpush1.msra.mxu0 0.0
        %1514 = vmatprep.subr.mxu0 0.0
        %1515 = vmatpush1.msra.mxu0 0.0
        %1516 = vmatprep.subr.mxu0 0.0
        %1517 = vmatpush1.msra.mxu0 0.0
        %1518 = vmatprep.subr.mxu0 0.0
        %1519 = vmatpush1.msra.mxu0 0.0
        %1520 = vmatprep.subr.mxu0 0.0
        %1521 = vmatpush1.msra.mxu0 0.0
        %1522 = vmatprep.subr.mxu0 0.0
        %1523 = vmatpush1.msra.mxu0 0.0
        %1524 = vmatprep.subr.mxu0 0.0
        %1525 = vmatpush1.msra.mxu0 0.0
        %1526 = vmatprep.subr.mxu0 0.0
        %1527 = vmatpush1.msra.mxu0 0.0
        %1528 = vmatprep.subr.mxu0 0.0
        %1529 = vmatpush1.msra.mxu0 0.0
        %1530 = vmatprep.subr.mxu0 0.0
        %1531 = vmatpush1.msra.mxu0 0.0
        %1532 = vmatprep.subr.mxu0 0.0
        %1533 = vmatpush1.msra.mxu0 0.0
        %1534 = vmatprep.subr.mxu0 0.0
        %1535 = vmatpush1.msra.mxu0 0.0
        %1536 = vmatprep.subr.mxu0 0.0
        %1537 = vmatpush1.msra.mxu0 0.0
        %1538 = vmatprep.subr.mxu0 0.0
        %1539 = vmatpush1.msra.mxu0 0.0
        %1540 = vmatprep.subr.mxu0 0.0
        %1541 = vmatpush1.msra.mxu0 0.0
        %1542 = vmatprep.subr.mxu0 0.0
        %1543 = vmatpush1.msra.mxu0 0.0
        %1544 = vmatprep.subr.mxu0 0.0
        %1545 = vmatpush1.msra.mxu0 0.0
        %1546 = vmatprep.mubr.f32.mxu0 0.0
        %1547 = vmatmul.mubr.f32.gmra.mrb[0].mxu0 %v1477
        %v1548 = vpop.f32.mrb[0].mxu0
        %v1549 = vadd.f32 0.0, %v1548
        %v1550 = vpop.f32.mrb[0].mxu0
        %1551 = vmatprep.mubr.f32.mxu0 0.0
        %1552 = vmatmul.mubr.f32.gmra.mrb[0].mxu0 %v1480
        %v1553 = vpop.f32.mrb[0].mxu0
        %v1554 = vadd.f32 0.0, %v1553
        %v1555 = vpop.f32.mrb[0].mxu0
        %1556 = vdwg.mxu0
        %v1557 = vrcp.pop %v1466
        %v1558 = vrcp.pop %v1469
        %v1559 = vmul.f32 %v1549, %v1557
        %v1560 = vmul.f32 %v1554, %v1558
        %1563 = vrot.lane.b32.xlu0 %v1027, 8
        %v1564 = vpop.permute.xlu0 %1563
        %1565 = vrot.lane.b32.xlu0 %v1028, 8
        %v1566 = vpop.permute.xlu0 %1565
        %1571 = vrot.lane.b32.xlu0 %v1293, 16
        %v1572 = vpop.permute.xlu0 %1571
        %1573 = vrot.lane.b32.xlu0 %v1294, 16
        %v1574 = vpop.permute.xlu0 %1573
        %1579 = vrot.lane.b32.xlu0 %v1559, 24
        %v1580 = vpop.permute.xlu0 %1579
        %1581 = vrot.lane.b32.xlu0 %v1560, 24
        %v1582 = vpop.permute.xlu0 %1581
        %v1585 = vsel %vm570, %v779, %v1564
        %v1586 = vsel %vm570, %v780, %v1566
        %v1587 = vsel %vm590, %v1585, %v1572
        %v1588 = vsel %vm590, %v1586, %v1574
        %vm1589 = vcmask 195584
        %v1590 = vsel %vm1589, %v1587, %v1580
        %v1591 = vsel %vm1589, %v1588, %v1582
        %1592 = vst.msk [vmem:[%s309] sm:$0xff] %vm322, %v1590
        %1593 = vst.msk [vmem:[%s309 + $0x8] sm:$0xff] %vm322, %v1591
        %s1594 = sand.u32 %s182, 1
        %s1595 = scalar_lea.sflag [#allocation4], %s1594
        %s1596 = sand.u32 %s182, 1
        %s1597 = smul.addr %s1596, 16
        %s1598 = scalar_lea.vmem [#allocation7], %s1597
        // Predicated region
        $region53: #{tpu_custom_call.1} parent=43 // pred_check
          %p1599 = pneg %p192
        $region54: #{tpu_custom_call.1} parent=43 // pred_check_branch
          %1601 = sbr.rel (%p1599) target = $region56
        $region55: #{tpu_custom_call.1} parent=43 // pred_region
          %s1602 = smul.u32 2, %s29
          %s1604 = ssub.s32 256, 256
          %1605 = vsyncadd %s1595, %s1604
          %s1606 = smul.addr %s28, 2
          %s1607 = sadd.s32 %s1602, %s1606
          %s1608 = smul.addr %s1607, 128
          %s1609 = scalar_lea.hbm %s6, %s1608
          %s1610 = sshll.u32 %s1598, 4
          %s1611 = int_to_ptr.vmem [resolvable:$true] %s1610
          %1616 = dma.vmem_to_hbm [thread:$0]  %s1611, 256, %s1609, %s1595, 128, 128, 8
        $region56: #{tpu_custom_call.1} parent=43 // pred_fallthru
          _
      $region44: #{tpu_custom_call.1} parent=5 // pred_fallthru
        _
      %p1617 = scmp.le.s32.totalorder 2, %s19
      // Predicated region
      $region57: #{tpu_custom_call.1} parent=5 // pred_check
        %p1618 = pneg %p1617
      $region58: #{tpu_custom_call.1} parent=5 // pred_check_branch
        %1620 = sbr.rel (%p1618) target = $region60
      $region59: #{tpu_custom_call.1} parent=5 // pred_region
        %s1621 = ssub.s32 %s19, 2
        // Predicated region
        $region61: #{tpu_custom_call.1} parent=59 // pred_check
          %p1622 = pneg %p198
        $region62: #{tpu_custom_call.1} parent=59 // pred_check_branch
          %1624 = sbr.rel (%p1622) target = $region64
        $region63: #{tpu_custom_call.1} parent=59 // pred_region
          %s1625 = sand.u32 %s183, 1
          %s1626 = scalar_lea.sflag [#allocation4], %s1625
          %s1627 = sand.u32 %s183, 1
          %s1628 = smul.addr %s1627, 16
          %s1629 = scalar_lea.vmem [#allocation7], %s1628
          %1630 = dma.done %s1626, 256
        $region64: #{tpu_custom_call.1} parent=59 // pred_fallthru
          _
      $region60: #{tpu_custom_call.1} parent=5 // pred_fallthru
        _
    $region6: #{tpu_custom_call.1} parent=1 // loop_footer
      %s23 = sadd.s32 1, %s19
    $region7: #{tpu_custom_call.1} parent=1 // loop_footer_branch
      %18 = sbr.rel target = $region3
    $region8: #{tpu_custom_call.1} parent=1 // loop_exit
      _
    %1631 = vsyncpa [#allocation3], 1
    %s1632 = scalar_lea.sflag [#allocation3], 1
    %1633 = vsyncpa %s1632, 1
    %1634 = vsyncpa [#allocation6], 1
    %1635 = vsyncpa [#allocation4], 1
    %s1636 = scalar_lea.sflag [#allocation4], 1
    %1637 = vsyncpa %s1636, 1

</llo_original>
